<compile_context>
chip_gen: v7x
topology: tpu7x:2x2x1
jax: 0.10.0
libtpu: 0.0.40
codegen_flags: <defaults>
</compile_context>

<pallas_src>
import math
import functools

import jax
import jax.numpy as jnp
from jax import lax
from jax.experimental import pallas as pl
from jax.experimental.pallas import tpu as pltpu


def _encoder_kernel(x_ref, ln1_g_ref, ln1_b_ref, w_qkv_ref, w_o_ref,
                    ln2_g_ref, ln2_b_ref, w1_ref, b1_ref, w2_ref, b2_ref,
                    lnf_g_ref, lnf_b_ref, o_ref, x_scratch,
                    *, num_heads, eps):
    layer = pl.program_id(1)
    num_layers = pl.num_programs(1)
    bt, S, E = x_ref.shape
    A = E // num_heads
    M = bt * S
    bf16 = jnp.bfloat16

    def layer_norm(v, g, b):
        mu = jnp.mean(v, axis=-1, keepdims=True)
        c = v - mu
        var = jnp.mean(c * c, axis=-1, keepdims=True)
        return c * lax.rsqrt(var + eps) * g + b          # rsqrt runs on the EUP

    # Layer 0 of each batch tile: load embedded + positionally-encoded input into the
    # float32 residual-stream scratch carried across the "arbitrary" layer axis.
    @pl.when(layer == 0)
    def _():
        x_scratch[...] = x_ref[...].reshape(M, E)

    x = x_scratch[...]                                   # (M, E) float32

    # ---- multi-head self-attention (pre-norm residual) --------------------------
    h = layer_norm(x, ln1_g_ref[0], ln1_b_ref[0])
    # One fused (M,E)@(E,3E) bf16 MXU push for Q,K,V of all heads; the 1/sqrt(A)
    # score scale is folded into the Q weight columns in the wrapper.
    qkv = jnp.dot(h.astype(bf16), w_qkv_ref[0],
                  preferred_element_type=jnp.float32)    # (M, 3E) f32
    qkv = qkv.reshape(bt, S, 3 * E)

    # TODO(synk): for production A not a multiple of 128, lay heads out on a leading
    # (non-lane) axis so these per-head lane slices stay tile-aligned.
    attn_proj = jnp.zeros((M, E), jnp.float32)
    for hd in range(num_heads):                          # static unroll over heads
        q = qkv[:, :, hd * A:(hd + 1) * A].astype(bf16)              # (bt, S, A)
        k = qkv[:, :, E + hd * A:E + (hd + 1) * A].astype(bf16)
        v = qkv[:, :, 2 * E + hd * A:2 * E + (hd + 1) * A].astype(bf16)
        # Q @ K^T contracting the A axis -- no K transpose materialized.
        s = jnp.einsum("bqa,bka->bqk", q, k,
                       preferred_element_type=jnp.float32)           # (bt, S, S)
        m = jnp.max(s, axis=-1, keepdims=True)
        e = jnp.exp(s - m)
        denom = jnp.sum(e, axis=-1, keepdims=True)
        p = e * pl.reciprocal(denom, approx=False)       # exact recip/row + multiply
        o_h = jnp.einsum("bqk,bka->bqa", p.astype(bf16), v,
                         preferred_element_type=jnp.float32)          # (bt, S, A)
        # Head concat folded into W_o: per-head lane-dense (A,E) matmul accumulation.
        attn_proj = attn_proj + jnp.dot(
            o_h.reshape(M, A).astype(bf16), w_o_ref[0, hd],
            preferred_element_type=jnp.float32)
    x = x + attn_proj

    # ---- feed-forward (pre-norm residual) ----------------------------------------
    h = layer_norm(x, ln2_g_ref[0], ln2_b_ref[0])
    f = jnp.dot(h.astype(bf16), w1_ref[0],
                preferred_element_type=jnp.float32) + b1_ref[0]
    f = jnp.maximum(f, 0.0)
    f = jnp.dot(f.astype(bf16), w2_ref[0],
                preferred_element_type=jnp.float32) + b2_ref[0]
    x = x + f

    x_scratch[...] = x

    # Final encoder LayerNorm, written once per batch tile at the last layer.
    @pl.when(layer == num_layers - 1)
    def _():
        y = layer_norm(x, lnf_g_ref[...], lnf_b_ref[...])
        # TODO(synk): if production E is not a multiple of 128, present the output as
        # (B, S*E) in out_specs for an unmasked lane-dense store.
        o_ref[...] = y.reshape(bt, S, E).astype(o_ref.dtype)


def _pick_batch_tile(B, S):
    """Largest divisor of B that keeps >=2 parallel grid steps (v7x megacore) while
    batching a reasonable number of matmul rows per step."""
    bt = 1
    for d in range(1, B + 1):
        if B % d == 0 and d * S <= 256 and (B // d >= 2 or B == 1):
            bt = d
    return bt


def encoder_forward(ids, emb_table, pos_features, blocks, lnf_g, lnf_b,
                    *, num_heads, batch_tile=None):
    """Pallas implementation of Encoder.forward (mask=None, inference/eval mode)."""
    B, S = ids.shape
    _, E = emb_table.shape
    A = E // num_heads
    H = num_heads
    NB = len(blocks)
    F = blocks[0]["w_ff1"].shape[0]
    assert S <= pos_features.shape[0], "sequence longer than PositionalEncoding max_len"

    if batch_tile is None:
        batch_tile = _pick_batch_tile(B, S)
    assert B % batch_tile == 0

    # nn.Dropout inside PositionalEncoding is identity at inference time.
    x = jnp.take(emb_table, ids, axis=0) + pos_features[None, :S, :]   # (B,S,E) f32

    inv_norm = 1.0 / math.sqrt(A)
    bf16 = jnp.bfloat16

    def fuse_qkv(blk):
        # Concatenate per-head projections (torch.cat order), fold the 1/sqrt(A)
        # score scale into the Q columns, cast to bf16 for the MXU.
        wq_t = jnp.concatenate([blk["w_q"][h].T for h in range(H)], axis=1)
        wk_t = jnp.concatenate([blk["w_k"][h].T for h in range(H)], axis=1)
        wv_t = jnp.concatenate([blk["w_v"][h].T for h in range(H)], axis=1)
        return jnp.concatenate([wq_t * inv_norm, wk_t, wv_t], axis=1)  # (E, 3E)

    w_qkv = jnp.stack([fuse_qkv(b) for b in blocks]).astype(bf16)      # (NB,E,3E)
    # Output projection pre-split per head: out = sum_h head_h @ W_o[:, h*A:(h+1)*A].T
    w_o = jnp.stack([
        jnp.stack([b["w_o"][:, h * A:(h + 1) * A].T for h in range(H)])
        for b in blocks]).astype(bf16)                                 # (NB,H,A,E)
    ln1_g = jnp.stack([b["ln1_g"][None, :] for b in blocks])           # (NB,1,E) f32
    ln1_b = jnp.stack([b["ln1_b"][None, :] for b in blocks])
    ln2_g = jnp.stack([b["ln2_g"][None, :] for b in blocks])
    ln2_b = jnp.stack([b["ln2_b"][None, :] for b in blocks])
    w1 = jnp.stack([b["w_ff1"].T for b in blocks]).astype(bf16)        # (NB,E,F)
    b1 = jnp.stack([b["b_ff1"][None, :] for b in blocks])              # (NB,1,F) f32
    w2 = jnp.stack([b["w_ff2"].T for b in blocks]).astype(bf16)        # (NB,F,E)
    b2 = jnp.stack([b["b_ff2"][None, :] for b in blocks])              # (NB,1,E) f32
    lnf_g2 = lnf_g[None, :]                                            # (1,E) f32
    lnf_b2 = lnf_b[None, :]

    kernel = functools.partial(_encoder_kernel, num_heads=H, eps=1e-5)

    seq_spec = pl.BlockSpec((batch_tile, S, E), lambda b, l: (b, 0, 0))
    layer3 = lambda shape: pl.BlockSpec(shape, lambda b, l: (l, 0, 0))      # streamed
    layer4 = lambda shape: pl.BlockSpec(shape, lambda b, l: (l, 0, 0, 0))   # streamed
    const2 = lambda shape: pl.BlockSpec(shape, lambda b, l: (0, 0))         # resident
    # NOTE: the resident final-LN params are only 2*E f32, so their default double
    # buffer is negligible; all large weights are per-layer streamed instead.

    # Scoped-VMEM budget: double-buffered streamed weights for one layer + activation
    # slab + headroom (default scoped limits bite long before physical capacity).
    per_layer_w = (E * 3 * E + H * A * E + E * F + F * E) * 2 + (4 * E + F + E) * 4
    act_bytes = batch_tile * S * E * 4
    vmem_limit = int(min(96 * 2 ** 20,
                         max(16 * 2 ** 20,
                             2 * per_layer_w + 16 * act_bytes + (2 << 20))))

    return pl.pallas_call(
        kernel,
        out_shape=jax.ShapeDtypeStruct((B, S, E), x.dtype),
        grid_spec=pltpu.PrefetchScalarGridSpec(
            num_scalar_prefetch=0,
            grid=(B // batch_tile, NB),
            in_specs=[
                seq_spec,
                layer3((1, 1, E)), layer3((1, 1, E)),
                layer3((1, E, 3 * E)), layer4((1, H, A, E)),
                layer3((1, 1, E)), layer3((1, 1, E)),
                layer3((1, E, F)), layer3((1, 1, F)),
                layer3((1, F, E)), layer3((1, 1, E)),
                const2((1, E)), const2((1, E)),
            ],
            out_specs=seq_spec,
            scratch_shapes=[pltpu.VMEM((batch_tile * S, E), jnp.float32)],
        ),
        compiler_params=pltpu.CompilerParams(
            dimension_semantics=("parallel", "arbitrary"),
            vmem_limit_bytes=vmem_limit,
        ),
    )(x, ln1_g, ln1_b, w_qkv, w_o, ln2_g, ln2_b, w1, b1, w2, b2, lnf_g2, lnf_b2)


def _reference_encoder(ids, emb_table, pos_features, blocks, lnf_g, lnf_b,
                       *, num_heads, eps=1e-5):
    # Plain-JAX (float32) mirror of the PyTorch Encoder.forward (mask=None, eval mode).
    E = emb_table.shape[1]
    A = E // num_heads
    S = ids.shape[1]
    x = emb_table[ids] + pos_features[None, :S, :]

    def ln(v, g, b):
        mu = v.mean(axis=-1, keepdims=True)
        var = ((v - mu) ** 2).mean(axis=-1, keepdims=True)
        return (v - mu) / jnp.sqrt(var + eps) * g + b

    for blk in blocks:
        h = ln(x, blk["ln1_g"], blk["ln1_b"])
        heads = []
        for hd in range(num_heads):
            Q = h @ blk["w_q"][hd].T
            K = h @ blk["w_k"][hd].T
            V = h @ blk["w_v"][hd].T
            s = jnp.einsum("bqa,bka->bqk", Q, K) / math.sqrt(A)
            p = jax.nn.softmax(s, axis=-1)
            heads.append(jnp.einsum("bqk,bka->bqa", p, V))
        x = x + jnp.concatenate(heads, axis=-1) @ blk["w_o"].T
        h = ln(x, blk["ln2_g"], blk["ln2_b"])
        f = jax.nn.relu(h @ blk["w_ff1"].T + blk["b_ff1"]) @ blk["w_ff2"].T + blk["b_ff2"]
        x = x + f
    return ln(x, lnf_g, lnf_b)


if __name__ == "__main__":
    num_blocks = 2
    num_tokens = 50
    embedding_size = 32          # E
    num_heads = 4                # A = 8
    feed_forward_size = 64
    max_len = 16
    B, S = 2, 8
    A = embedding_size // num_heads

    key = jax.random.PRNGKey(0)
    kit = iter(jax.random.split(key, 80))
    nk = lambda: next(kit)

    def uni(k, shape, fan_in):
        bound = 1.0 / math.sqrt(fan_in)
        return jax.random.uniform(k, shape, jnp.float32, -bound, bound)

    emb_table = 0.5 * jax.random.normal(nk(), (num_tokens, embedding_size), jnp.float32)
    emb_table = emb_table.at[3].set(0.0)     # nn.Embedding(padding_idx=3): zero row

    # PositionalEncoding buffer, built exactly like the PyTorch module.
    positions = jnp.arange(max_len, dtype=jnp.float32)[:, None]
    freqs = jnp.exp(jnp.arange(0, embedding_size, 2, dtype=jnp.float32)
                    * (-math.log(10000.0) / embedding_size))[None, :]
    args = positions * freqs
    pos_features = jnp.zeros((max_len, embedding_size), jnp.float32)
    pos_features = pos_features.at[:, 0::2].set(jnp.sin(args))
    pos_features = pos_features.at[:, 1::2].set(jnp.cos(args))

    blocks = []
    for _ in range(num_blocks):
        blocks.append(dict(
            w_q=uni(nk(), (num_heads, A, embedding_size), embedding_size),
            w_k=uni(nk(), (num_heads, A, embedding_size), embedding_size),
            w_v=uni(nk(), (num_heads, A, embedding_size), embedding_size),
            w_o=uni(nk(), (embedding_size, embedding_size), embedding_size),
            ln1_g=1.0 + 0.1 * jax.random.normal(nk(), (embedding_size,), jnp.float32),
            ln1_b=0.1 * jax.random.normal(nk(), (embedding_size,), jnp.float32),
            ln2_g=1.0 + 0.1 * jax.random.normal(nk(), (embedding_size,), jnp.float32),
            ln2_b=0.1 * jax.random.normal(nk(), (embedding_size,), jnp.float32),
            w_ff1=uni(nk(), (feed_forward_size, embedding_size), embedding_size),
            b_ff1=uni(nk(), (feed_forward_size,), embedding_size),
            w_ff2=uni(nk(), (embedding_size, feed_forward_size), feed_forward_size),
            b_ff2=uni(nk(), (embedding_size,), feed_forward_size),
        ))
    lnf_g = 1.0 + 0.1 * jax.random.normal(nk(), (embedding_size,), jnp.float32)
    lnf_b = 0.1 * jax.random.normal(nk(), (embedding_size,), jnp.float32)

    ids = jax.random.randint(nk(), (B, S), 0, num_tokens)

    out = encoder_forward(ids, emb_table, pos_features, blocks, lnf_g, lnf_b,
                          num_heads=num_heads)
    out = jax.block_until_ready(out)

    with jax.default_matmul_precision("highest"):
        ref = _reference_encoder(ids, emb_table, pos_features, blocks, lnf_g, lnf_b,
                                 num_heads=num_heads)
    ref = jax.block_until_ready(ref)

    assert out.shape == (B, S, embedding_size)
    assert not bool(jnp.any(jnp.isnan(out))), "NaNs in kernel output"
    # bf16 MXU operands (f32 accumulation) vs a pure-f32 reference: bf16-level tolerance.
    assert jnp.allclose(out, ref, atol=5e-2, rtol=5e-2), "mismatch vs reference"

    print("KERNEL_OK")
</pallas_src>

<mosaic_0001>
module attributes {stable_mosaic.version = 11 : i64} {
  func.func @_encoder_kernel(%arg0: i32, %arg1: i32, %arg2: memref<1x8x32xf32, #tpu.memory_space<vmem>>, %arg3: memref<1x1x32xf32, #tpu.memory_space<vmem>>, %arg4: memref<1x1x32xf32, #tpu.memory_space<vmem>>, %arg5: memref<1x32x96xbf16, #tpu.memory_space<vmem>>, %arg6: memref<1x4x8x32xbf16, #tpu.memory_space<vmem>>, %arg7: memref<1x1x32xf32, #tpu.memory_space<vmem>>, %arg8: memref<1x1x32xf32, #tpu.memory_space<vmem>>, %arg9: memref<1x32x64xbf16, #tpu.memory_space<vmem>>, %arg10: memref<1x1x64xf32, #tpu.memory_space<vmem>>, %arg11: memref<1x64x32xbf16, #tpu.memory_space<vmem>>, %arg12: memref<1x1x32xf32, #tpu.memory_space<vmem>>, %arg13: memref<1x32xf32, #tpu.memory_space<vmem>>, %arg14: memref<1x32xf32, #tpu.memory_space<vmem>>, %arg15: memref<1x8x32xf32, #tpu.memory_space<vmem>>, %arg16: memref<8x32xf32, #tpu.memory_space<vmem>>) attributes {dimension_semantics = [#tpu.dimension_semantics<parallel>, #tpu.dimension_semantics<arbitrary>], iteration_bounds = array<i64: 2, 2>, scalar_prefetch = 0 : i64, scratch_operands = 1 : i64, tpu.core_type = #tpu.core_type<tc>, window_params = [{transform_indices = @transform_0, window_bounds = array<i64: 1, 8, 32>}, {transform_indices = @transform_1, window_bounds = array<i64: 1, 1, 32>}, {transform_indices = @transform_2, window_bounds = array<i64: 1, 1, 32>}, {transform_indices = @transform_3, window_bounds = array<i64: 1, 32, 96>}, {transform_indices = @transform_4, window_bounds = array<i64: 1, 4, 8, 32>}, {transform_indices = @transform_5, window_bounds = array<i64: 1, 1, 32>}, {transform_indices = @transform_6, window_bounds = array<i64: 1, 1, 32>}, {transform_indices = @transform_7, window_bounds = array<i64: 1, 32, 64>}, {transform_indices = @transform_8, window_bounds = array<i64: 1, 1, 64>}, {transform_indices = @transform_9, window_bounds = array<i64: 1, 64, 32>}, {transform_indices = @transform_10, window_bounds = array<i64: 1, 1, 32>}, {pipeline_mode = #tpu.pipeline_mode<synchronous>, transform_indices = @transform_11, window_bounds = array<i64: 1, 32>}, {pipeline_mode = #tpu.pipeline_mode<synchronous>, transform_indices = @transform_12, window_bounds = array<i64: 1, 32>}, {transform_indices = @transform_13, window_bounds = array<i64: 1, 8, 32>}]} {
    %c0_i32 = arith.constant 0 : i32
    %0 = arith.cmpi eq, %arg1, %c0_i32 : i32
    %1 = arith.extui %0 : i1 to i32
    %c0_i32_0 = arith.constant 0 : i32
    %2 = arith.cmpi ne, %1, %c0_i32_0 : i32
    scf.if %2 {
      %c0_79 = arith.constant 0 : index
      %c0_80 = arith.constant 0 : index
      %c0_81 = arith.constant 0 : index
      %182 = vector.load %arg2[%c0_79, %c0_80, %c0_81] : memref<1x8x32xf32, #tpu.memory_space<vmem>>, vector<1x8x32xf32>
      %183 = vector.shape_cast %182 : vector<1x8x32xf32> to vector<8x32xf32>
      %c0_82 = arith.constant 0 : index
      %c0_83 = arith.constant 0 : index
      %184 = vector.load %arg16[%c0_82, %c0_83] : memref<8x32xf32, #tpu.memory_space<vmem>>, vector<8x32xf32>
      tpu.vector_store %arg16[%c0_82, %c0_83], %183 {strides = array<i32>} : memref<8x32xf32, #tpu.memory_space<vmem>>, vector<8x32xf32>,
    } else {
    }
    %c0 = arith.constant 0 : index
    %c0_1 = arith.constant 0 : index
    %3 = vector.load %arg16[%c0, %c0_1] : memref<8x32xf32, #tpu.memory_space<vmem>>, vector<8x32xf32>
    %c0_2 = arith.constant 0 : index
    %c0_3 = arith.constant 0 : index
    %c0_4 = arith.constant 0 : index
    %4 = vector.load %arg3[%c0_2, %c0_3, %c0_4] : memref<1x1x32xf32, #tpu.memory_space<vmem>>, vector<1x1x32xf32>
    %5 = vector.shape_cast %4 : vector<1x1x32xf32> to vector<1x32xf32>
    %c0_5 = arith.constant 0 : index
    %c0_6 = arith.constant 0 : index
    %c0_7 = arith.constant 0 : index
    %6 = vector.load %arg4[%c0_5, %c0_6, %c0_7] : memref<1x1x32xf32, #tpu.memory_space<vmem>>, vector<1x1x32xf32>
    %7 = vector.shape_cast %6 : vector<1x1x32xf32> to vector<1x32xf32>
    %cst = arith.constant dense<0.000000e+00> : vector<8xf32>
    %8 = vector.multi_reduction <add>, %3, %cst [1] : vector<8x32xf32> to vector<8xf32>
    %9 = vector.shape_cast %8 : vector<8xf32> to vector<8x1xf32>
    %cst_8 = arith.constant 3.200000e+01 : f32
    %10 = vector.broadcast %cst_8 : f32 to vector<8x1xf32>
    %11 = arith.divf %9, %10 : vector<8x1xf32>
    %12 = vector.broadcast %11 : vector<8x1xf32> to vector<8x32xf32>
    %13 = arith.subf %3, %12 : vector<8x32xf32>
    %14 = arith.mulf %13, %13 : vector<8x32xf32>
    %cst_9 = arith.constant dense<0.000000e+00> : vector<8xf32>
    %15 = vector.multi_reduction <add>, %14, %cst_9 [1] : vector<8x32xf32> to vector<8xf32>
    %16 = vector.shape_cast %15 : vector<8xf32> to vector<8x1xf32>
    %cst_10 = arith.constant 3.200000e+01 : f32
    %17 = vector.broadcast %cst_10 : f32 to vector<8x1xf32>
    %18 = arith.divf %16, %17 : vector<8x1xf32>
    %cst_11 = arith.constant 9.99999974E-6 : f32
    %19 = vector.broadcast %cst_11 : f32 to vector<8x1xf32>
    %20 = arith.addf %18, %19 : vector<8x1xf32>
    %21 = math.rsqrt %20 : vector<8x1xf32>
    %22 = vector.broadcast %21 : vector<8x1xf32> to vector<8x32xf32>
    %23 = arith.mulf %13, %22 : vector<8x32xf32>
    %24 = vector.broadcast %5 : vector<1x32xf32> to vector<8x32xf32>
    %25 = arith.mulf %23, %24 : vector<8x32xf32>
    %26 = vector.broadcast %7 : vector<1x32xf32> to vector<8x32xf32>
    %27 = arith.addf %25, %26 : vector<8x32xf32>
    %28 = arith.truncf %27 : vector<8x32xf32> to vector<8x32xbf16>
    %c0_12 = arith.constant 0 : index
    %c0_13 = arith.constant 0 : index
    %c0_14 = arith.constant 0 : index
    %29 = vector.load %arg5[%c0_12, %c0_13, %c0_14] : memref<1x32x96xbf16, #tpu.memory_space<vmem>>, vector<1x32x96xbf16>
    %30 = vector.shape_cast %29 : vector<1x32x96xbf16> to vector<32x96xbf16>
    %cst_15 = arith.constant dense<0.000000e+00> : vector<8x96xf32>
    %31 = tpu.matmul %28, %30, %cst_15 {dimension_numbers = #tpu.dot_dimension_numbers<[1], [0], [0], [1], [0, 0, 1, 1], [], []>} : vector<8x32xbf16>, vector<32x96xbf16>, vector<8x96xf32> -> vector<8x96xf32>
    %32 = vector.shape_cast %31 : vector<8x96xf32> to vector<1x8x96xf32>
    %cst_16 = arith.constant 0.000000e+00 : f32
    %33 = vector.broadcast %cst_16 : f32 to vector<8x32xf32>
    %34 = vector.extract_strided_slice %32 {offsets = [0, 0, 0], sizes = [1, 8, 8], strides = [1, 1, 1]} : vector<1x8x96xf32> to vector<1x8x8xf32>
    %35 = arith.truncf %34 : vector<1x8x8xf32> to vector<1x8x8xbf16>
    %36 = vector.extract_strided_slice %32 {offsets = [0, 0, 32], sizes = [1, 8, 8], strides = [1, 1, 1]} : vector<1x8x96xf32> to vector<1x8x8xf32>
    %37 = arith.truncf %36 : vector<1x8x8xf32> to vector<1x8x8xbf16>
    %38 = vector.extract_strided_slice %32 {offsets = [0, 0, 64], sizes = [1, 8, 8], strides = [1, 1, 1]} : vector<1x8x96xf32> to vector<1x8x8xf32>
    %39 = arith.truncf %38 : vector<1x8x8xf32> to vector<1x8x8xbf16>
    "tpu.trace_start"() <{level = 10 : i32, message = "bqa,bka->bqk"}> : () -> ()
    %cst_17 = arith.constant dense<0.000000e+00> : vector<1x8x8xf32>
    %40 = tpu.matmul %35, %37, %cst_17 {dimension_numbers = #tpu.dot_dimension_numbers<[2], [2], [1], [1], [0, 0, 0, 1, 1, 1], [0], [0]>} : vector<1x8x8xbf16>, vector<1x8x8xbf16>, vector<1x8x8xf32> -> vector<1x8x8xf32>
    "tpu.trace_stop"() : () -> ()
    %cst_18 = arith.constant dense<0xFF800000> : vector<1x8xf32>
    %41 = vector.multi_reduction <maximumf>, %40, %cst_18 [2] : vector<1x8x8xf32> to vector<1x8xf32>
    %42 = vector.shape_cast %41 : vector<1x8xf32> to vector<1x8x1xf32>
    %43 = vector.broadcast %42 : vector<1x8x1xf32> to vector<1x8x8xf32>
    %44 = arith.subf %40, %43 : vector<1x8x8xf32>
    %45 = math.exp %44 : vector<1x8x8xf32>
    %cst_19 = arith.constant dense<0.000000e+00> : vector<1x8xf32>
    %46 = vector.multi_reduction <add>, %45, %cst_19 [2] : vector<1x8x8xf32> to vector<1x8xf32>
    %47 = vector.shape_cast %46 : vector<1x8xf32> to vector<1x8x1xf32>
    %48 = tpu.reciprocal %47 : vector<1x8x1xf32> -> vector<1x8x1xf32>
    %49 = vector.broadcast %48 : vector<1x8x1xf32> to vector<1x8x8xf32>
    %50 = arith.mulf %45, %49 : vector<1x8x8xf32>
    %51 = arith.truncf %50 : vector<1x8x8xf32> to vector<1x8x8xbf16>
    "tpu.trace_start"() <{level = 10 : i32, message = "bqk,bka->bqa"}> : () -> ()
    %cst_20 = arith.constant dense<0.000000e+00> : vector<1x8x8xf32>
    %52 = tpu.matmul %51, %39, %cst_20 {dimension_numbers = #tpu.dot_dimension_numbers<[2], [1], [1], [2], [0, 0, 0, 1, 1, 2], [0], [0]>} : vector<1x8x8xbf16>, vector<1x8x8xbf16>, vector<1x8x8xf32> -> vector<1x8x8xf32>
    "tpu.trace_stop"() : () -> ()
    %53 = vector.shape_cast %52 : vector<1x8x8xf32> to vector<8x8xf32>
    %54 = arith.truncf %53 : vector<8x8xf32> to vector<8x8xbf16>
    %c0_21 = arith.constant 0 : index
    %c0_22 = arith.constant 0 : index
    %c0_23 = arith.constant 0 : index
    %c0_24 = arith.constant 0 : index
    %55 = vector.load %arg6[%c0_21, %c0_22, %c0_23, %c0_24] : memref<1x4x8x32xbf16, #tpu.memory_space<vmem>>, vector<1x1x8x32xbf16>
    %56 = vector.shape_cast %55 : vector<1x1x8x32xbf16> to vector<8x32xbf16>
    %cst_25 = arith.constant dense<0.000000e+00> : vector<8x32xf32>
    %57 = tpu.matmul %54, %56, %cst_25 {dimension_numbers = #tpu.dot_dimension_numbers<[1], [0], [0], [1], [0, 0, 1, 1], [], []>} : vector<8x8xbf16>, vector<8x32xbf16>, vector<8x32xf32> -> vector<8x32xf32>
    %58 = arith.addf %33, %57 : vector<8x32xf32>
    %59 = vector.extract_strided_slice %32 {offsets = [0, 0, 8], sizes = [1, 8, 8], strides = [1, 1, 1]} : vector<1x8x96xf32> to vector<1x8x8xf32>
    %60 = arith.truncf %59 : vector<1x8x8xf32> to vector<1x8x8xbf16>
    %61 = vector.extract_strided_slice %32 {offsets = [0, 0, 40], sizes = [1, 8, 8], strides = [1, 1, 1]} : vector<1x8x96xf32> to vector<1x8x8xf32>
    %62 = arith.truncf %61 : vector<1x8x8xf32> to vector<1x8x8xbf16>
    %63 = vector.extract_strided_slice %32 {offsets = [0, 0, 72], sizes = [1, 8, 8], strides = [1, 1, 1]} : vector<1x8x96xf32> to vector<1x8x8xf32>
    %64 = arith.truncf %63 : vector<1x8x8xf32> to vector<1x8x8xbf16>
    "tpu.trace_start"() <{level = 10 : i32, message = "bqa,bka->bqk"}> : () -> ()
    %cst_26 = arith.constant dense<0.000000e+00> : vector<1x8x8xf32>
    %65 = tpu.matmul %60, %62, %cst_26 {dimension_numbers = #tpu.dot_dimension_numbers<[2], [2], [1], [1], [0, 0, 0, 1, 1, 1], [0], [0]>} : vector<1x8x8xbf16>, vector<1x8x8xbf16>, vector<1x8x8xf32> -> vector<1x8x8xf32>
    "tpu.trace_stop"() : () -> ()
    %cst_27 = arith.constant dense<0xFF800000> : vector<1x8xf32>
    %66 = vector.multi_reduction <maximumf>, %65, %cst_27 [2] : vector<1x8x8xf32> to vector<1x8xf32>
    %67 = vector.shape_cast %66 : vector<1x8xf32> to vector<1x8x1xf32>
    %68 = vector.broadcast %67 : vector<1x8x1xf32> to vector<1x8x8xf32>
    %69 = arith.subf %65, %68 : vector<1x8x8xf32>
    %70 = math.exp %69 : vector<1x8x8xf32>
    %cst_28 = arith.constant dense<0.000000e+00> : vector<1x8xf32>
    %71 = vector.multi_reduction <add>, %70, %cst_28 [2] : vector<1x8x8xf32> to vector<1x8xf32>
    %72 = vector.shape_cast %71 : vector<1x8xf32> to vector<1x8x1xf32>
    %73 = tpu.reciprocal %72 : vector<1x8x1xf32> -> vector<1x8x1xf32>
    %74 = vector.broadcast %73 : vector<1x8x1xf32> to vector<1x8x8xf32>
    %75 = arith.mulf %70, %74 : vector<1x8x8xf32>
    %76 = arith.truncf %75 : vector<1x8x8xf32> to vector<1x8x8xbf16>
    "tpu.trace_start"() <{level = 10 : i32, message = "bqk,bka->bqa"}> : () -> ()
    %cst_29 = arith.constant dense<0.000000e+00> : vector<1x8x8xf32>
    %77 = tpu.matmul %76, %64, %cst_29 {dimension_numbers = #tpu.dot_dimension_numbers<[2], [1], [1], [2], [0, 0, 0, 1, 1, 2], [0], [0]>} : vector<1x8x8xbf16>, vector<1x8x8xbf16>, vector<1x8x8xf32> -> vector<1x8x8xf32>
    "tpu.trace_stop"() : () -> ()
    %78 = vector.shape_cast %77 : vector<1x8x8xf32> to vector<8x8xf32>
    %79 = arith.truncf %78 : vector<8x8xf32> to vector<8x8xbf16>
    %c0_30 = arith.constant 0 : index
    %c1 = arith.constant 1 : index
    %c0_31 = arith.constant 0 : index
    %c0_32 = arith.constant 0 : index
    %80 = vector.load %arg6[%c0_30, %c1, %c0_31, %c0_32] : memref<1x4x8x32xbf16, #tpu.memory_space<vmem>>, vector<1x1x8x32xbf16>
    %81 = vector.shape_cast %80 : vector<1x1x8x32xbf16> to vector<8x32xbf16>
    %cst_33 = arith.constant dense<0.000000e+00> : vector<8x32xf32>
    %82 = tpu.matmul %79, %81, %cst_33 {dimension_numbers = #tpu.dot_dimension_numbers<[1], [0], [0], [1], [0, 0, 1, 1], [], []>} : vector<8x8xbf16>, vector<8x32xbf16>, vector<8x32xf32> -> vector<8x32xf32>
    %83 = arith.addf %58, %82 : vector<8x32xf32>
    %84 = vector.extract_strided_slice %32 {offsets = [0, 0, 16], sizes = [1, 8, 8], strides = [1, 1, 1]} : vector<1x8x96xf32> to vector<1x8x8xf32>
    %85 = arith.truncf %84 : vector<1x8x8xf32> to vector<1x8x8xbf16>
    %86 = vector.extract_strided_slice %32 {offsets = [0, 0, 48], sizes = [1, 8, 8], strides = [1, 1, 1]} : vector<1x8x96xf32> to vector<1x8x8xf32>
    %87 = arith.truncf %86 : vector<1x8x8xf32> to vector<1x8x8xbf16>
    %88 = vector.extract_strided_slice %32 {offsets = [0, 0, 80], sizes = [1, 8, 8], strides = [1, 1, 1]} : vector<1x8x96xf32> to vector<1x8x8xf32>
    %89 = arith.truncf %88 : vector<1x8x8xf32> to vector<1x8x8xbf16>
    "tpu.trace_start"() <{level = 10 : i32, message = "bqa,bka->bqk"}> : () -> ()
    %cst_34 = arith.constant dense<0.000000e+00> : vector<1x8x8xf32>
    %90 = tpu.matmul %85, %87, %cst_34 {dimension_numbers = #tpu.dot_dimension_numbers<[2], [2], [1], [1], [0, 0, 0, 1, 1, 1], [0], [0]>} : vector<1x8x8xbf16>, vector<1x8x8xbf16>, vector<1x8x8xf32> -> vector<1x8x8xf32>
    "tpu.trace_stop"() : () -> ()
    %cst_35 = arith.constant dense<0xFF800000> : vector<1x8xf32>
    %91 = vector.multi_reduction <maximumf>, %90, %cst_35 [2] : vector<1x8x8xf32> to vector<1x8xf32>
    %92 = vector.shape_cast %91 : vector<1x8xf32> to vector<1x8x1xf32>
    %93 = vector.broadcast %92 : vector<1x8x1xf32> to vector<1x8x8xf32>
    %94 = arith.subf %90, %93 : vector<1x8x8xf32>
    %95 = math.exp %94 : vector<1x8x8xf32>
    %cst_36 = arith.constant dense<0.000000e+00> : vector<1x8xf32>
    %96 = vector.multi_reduction <add>, %95, %cst_36 [2] : vector<1x8x8xf32> to vector<1x8xf32>
    %97 = vector.shape_cast %96 : vector<1x8xf32> to vector<1x8x1xf32>
    %98 = tpu.reciprocal %97 : vector<1x8x1xf32> -> vector<1x8x1xf32>
    %99 = vector.broadcast %98 : vector<1x8x1xf32> to vector<1x8x8xf32>
    %100 = arith.mulf %95, %99 : vector<1x8x8xf32>
    %101 = arith.truncf %100 : vector<1x8x8xf32> to vector<1x8x8xbf16>
    "tpu.trace_start"() <{level = 10 : i32, message = "bqk,bka->bqa"}> : () -> ()
    %cst_37 = arith.constant dense<0.000000e+00> : vector<1x8x8xf32>
    %102 = tpu.matmul %101, %89, %cst_37 {dimension_numbers = #tpu.dot_dimension_numbers<[2], [1], [1], [2], [0, 0, 0, 1, 1, 2], [0], [0]>} : vector<1x8x8xbf16>, vector<1x8x8xbf16>, vector<1x8x8xf32> -> vector<1x8x8xf32>
    "tpu.trace_stop"() : () -> ()
    %103 = vector.shape_cast %102 : vector<1x8x8xf32> to vector<8x8xf32>
    %104 = arith.truncf %103 : vector<8x8xf32> to vector<8x8xbf16>
    %c0_38 = arith.constant 0 : index
    %c2 = arith.constant 2 : index
    %c0_39 = arith.constant 0 : index
    %c0_40 = arith.constant 0 : index
    %105 = vector.load %arg6[%c0_38, %c2, %c0_39, %c0_40] : memref<1x4x8x32xbf16, #tpu.memory_space<vmem>>, vector<1x1x8x32xbf16>
    %106 = vector.shape_cast %105 : vector<1x1x8x32xbf16> to vector<8x32xbf16>
    %cst_41 = arith.constant dense<0.000000e+00> : vector<8x32xf32>
    %107 = tpu.matmul %104, %106, %cst_41 {dimension_numbers = #tpu.dot_dimension_numbers<[1], [0], [0], [1], [0, 0, 1, 1], [], []>} : vector<8x8xbf16>, vector<8x32xbf16>, vector<8x32xf32> -> vector<8x32xf32>
    %108 = arith.addf %83, %107 : vector<8x32xf32>
    %109 = vector.extract_strided_slice %32 {offsets = [0, 0, 24], sizes = [1, 8, 8], strides = [1, 1, 1]} : vector<1x8x96xf32> to vector<1x8x8xf32>
    %110 = arith.truncf %109 : vector<1x8x8xf32> to vector<1x8x8xbf16>
    %111 = vector.extract_strided_slice %32 {offsets = [0, 0, 56], sizes = [1, 8, 8], strides = [1, 1, 1]} : vector<1x8x96xf32> to vector<1x8x8xf32>
    %112 = arith.truncf %111 : vector<1x8x8xf32> to vector<1x8x8xbf16>
    %113 = vector.extract_strided_slice %32 {offsets = [0, 0, 88], sizes = [1, 8, 8], strides = [1, 1, 1]} : vector<1x8x96xf32> to vector<1x8x8xf32>
    %114 = arith.truncf %113 : vector<1x8x8xf32> to vector<1x8x8xbf16>
    "tpu.trace_start"() <{level = 10 : i32, message = "bqa,bka->bqk"}> : () -> ()
    %cst_42 = arith.constant dense<0.000000e+00> : vector<1x8x8xf32>
    %115 = tpu.matmul %110, %112, %cst_42 {dimension_numbers = #tpu.dot_dimension_numbers<[2], [2], [1], [1], [0, 0, 0, 1, 1, 1], [0], [0]>} : vector<1x8x8xbf16>, vector<1x8x8xbf16>, vector<1x8x8xf32> -> vector<1x8x8xf32>
    "tpu.trace_stop"() : () -> ()
    %cst_43 = arith.constant dense<0xFF800000> : vector<1x8xf32>
    %116 = vector.multi_reduction <maximumf>, %115, %cst_43 [2] : vector<1x8x8xf32> to vector<1x8xf32>
    %117 = vector.shape_cast %116 : vector<1x8xf32> to vector<1x8x1xf32>
    %118 = vector.broadcast %117 : vector<1x8x1xf32> to vector<1x8x8xf32>
    %119 = arith.subf %115, %118 : vector<1x8x8xf32>
    %120 = math.exp %119 : vector<1x8x8xf32>
    %cst_44 = arith.constant dense<0.000000e+00> : vector<1x8xf32>
    %121 = vector.multi_reduction <add>, %120, %cst_44 [2] : vector<1x8x8xf32> to vector<1x8xf32>
    %122 = vector.shape_cast %121 : vector<1x8xf32> to vector<1x8x1xf32>
    %123 = tpu.reciprocal %122 : vector<1x8x1xf32> -> vector<1x8x1xf32>
    %124 = vector.broadcast %123 : vector<1x8x1xf32> to vector<1x8x8xf32>
    %125 = arith.mulf %120, %124 : vector<1x8x8xf32>
    %126 = arith.truncf %125 : vector<1x8x8xf32> to vector<1x8x8xbf16>
    "tpu.trace_start"() <{level = 10 : i32, message = "bqk,bka->bqa"}> : () -> ()
    %cst_45 = arith.constant dense<0.000000e+00> : vector<1x8x8xf32>
    %127 = tpu.matmul %126, %114, %cst_45 {dimension_numbers = #tpu.dot_dimension_numbers<[2], [1], [1], [2], [0, 0, 0, 1, 1, 2], [0], [0]>} : vector<1x8x8xbf16>, vector<1x8x8xbf16>, vector<1x8x8xf32> -> vector<1x8x8xf32>
    "tpu.trace_stop"() : () -> ()
    %128 = vector.shape_cast %127 : vector<1x8x8xf32> to vector<8x8xf32>
    %129 = arith.truncf %128 : vector<8x8xf32> to vector<8x8xbf16>
    %c0_46 = arith.constant 0 : index
    %c3 = arith.constant 3 : index
    %c0_47 = arith.constant 0 : index
    %c0_48 = arith.constant 0 : index
    %130 = vector.load %arg6[%c0_46, %c3, %c0_47, %c0_48] : memref<1x4x8x32xbf16, #tpu.memory_space<vmem>>, vector<1x1x8x32xbf16>
    %131 = vector.shape_cast %130 : vector<1x1x8x32xbf16> to vector<8x32xbf16>
    %cst_49 = arith.constant dense<0.000000e+00> : vector<8x32xf32>
    %132 = tpu.matmul %129, %131, %cst_49 {dimension_numbers = #tpu.dot_dimension_numbers<[1], [0], [0], [1], [0, 0, 1, 1], [], []>} : vector<8x8xbf16>, vector<8x32xbf16>, vector<8x32xf32> -> vector<8x32xf32>
    %133 = arith.addf %108, %132 : vector<8x32xf32>
    %134 = arith.addf %3, %133 : vector<8x32xf32>
    %c0_50 = arith.constant 0 : index
    %c0_51 = arith.constant 0 : index
    %c0_52 = arith.constant 0 : index
    %135 = vector.load %arg7[%c0_50, %c0_51, %c0_52] : memref<1x1x32xf32, #tpu.memory_space<vmem>>, vector<1x1x32xf32>
    %136 = vector.shape_cast %135 : vector<1x1x32xf32> to vector<1x32xf32>
    %c0_53 = arith.constant 0 : index
    %c0_54 = arith.constant 0 : index
    %c0_55 = arith.constant 0 : index
    %137 = vector.load %arg8[%c0_53, %c0_54, %c0_55] : memref<1x1x32xf32, #tpu.memory_space<vmem>>, vector<1x1x32xf32>
    %138 = vector.shape_cast %137 : vector<1x1x32xf32> to vector<1x32xf32>
    %cst_56 = arith.constant dense<0.000000e+00> : vector<8xf32>
    %139 = vector.multi_reduction <add>, %134, %cst_56 [1] : vector<8x32xf32> to vector<8xf32>
    %140 = vector.shape_cast %139 : vector<8xf32> to vector<8x1xf32>
    %cst_57 = arith.constant 3.200000e+01 : f32
    %141 = vector.broadcast %cst_57 : f32 to vector<8x1xf32>
    %142 = arith.divf %140, %141 : vector<8x1xf32>
    %143 = vector.broadcast %142 : vector<8x1xf32> to vector<8x32xf32>
    %144 = arith.subf %134, %143 : vector<8x32xf32>
    %145 = arith.mulf %144, %144 : vector<8x32xf32>
    %cst_58 = arith.constant dense<0.000000e+00> : vector<8xf32>
    %146 = vector.multi_reduction <add>, %145, %cst_58 [1] : vector<8x32xf32> to vector<8xf32>
    %147 = vector.shape_cast %146 : vector<8xf32> to vector<8x1xf32>
    %cst_59 = arith.constant 3.200000e+01 : f32
    %148 = vector.broadcast %cst_59 : f32 to vector<8x1xf32>
    %149 = arith.divf %147, %148 : vector<8x1xf32>
    %cst_60 = arith.constant 9.99999974E-6 : f32
    %150 = vector.broadcast %cst_60 : f32 to vector<8x1xf32>
    %151 = arith.addf %149, %150 : vector<8x1xf32>
    %152 = math.rsqrt %151 : vector<8x1xf32>
    %153 = vector.broadcast %152 : vector<8x1xf32> to vector<8x32xf32>
    %154 = arith.mulf %144, %153 : vector<8x32xf32>
    %155 = vector.broadcast %136 : vector<1x32xf32> to vector<8x32xf32>
    %156 = arith.mulf %154, %155 : vector<8x32xf32>
    %157 = vector.broadcast %138 : vector<1x32xf32> to vector<8x32xf32>
    %158 = arith.addf %156, %157 : vector<8x32xf32>
    %159 = arith.truncf %158 : vector<8x32xf32> to vector<8x32xbf16>
    %c0_61 = arith.constant 0 : index
    %c0_62 = arith.constant 0 : index
    %c0_63 = arith.constant 0 : index
    %160 = vector.load %arg9[%c0_61, %c0_62, %c0_63] : memref<1x32x64xbf16, #tpu.memory_space<vmem>>, vector<1x32x64xbf16>
    %161 = vector.shape_cast %160 : vector<1x32x64xbf16> to vector<32x64xbf16>
    %cst_64 = arith.constant dense<0.000000e+00> : vector<8x64xf32>
    %162 = tpu.matmul %159, %161, %cst_64 {dimension_numbers = #tpu.dot_dimension_numbers<[1], [0], [0], [1], [0, 0, 1, 1], [], []>} : vector<8x32xbf16>, vector<32x64xbf16>, vector<8x64xf32> -> vector<8x64xf32>
    %c0_65 = arith.constant 0 : index
    %c0_66 = arith.constant 0 : index
    %c0_67 = arith.constant 0 : index
    %163 = vector.load %arg10[%c0_65, %c0_66, %c0_67] : memref<1x1x64xf32, #tpu.memory_space<vmem>>, vector<1x1x64xf32>
    %164 = vector.shape_cast %163 : vector<1x1x64xf32> to vector<1x64xf32>
    %165 = vector.broadcast %164 : vector<1x64xf32> to vector<8x64xf32>
    %166 = arith.addf %162, %165 : vector<8x64xf32>
    %cst_68 = arith.constant 0.000000e+00 : f32
    %167 = vector.broadcast %cst_68 : f32 to vector<8x64xf32>
    %168 = arith.maximumf %166, %167 : vector<8x64xf32>
    %169 = arith.truncf %168 : vector<8x64xf32> to vector<8x64xbf16>
    %c0_69 = arith.constant 0 : index
    %c0_70 = arith.constant 0 : index
    %c0_71 = arith.constant 0 : index
    %170 = vector.load %arg11[%c0_69, %c0_70, %c0_71] : memref<1x64x32xbf16, #tpu.memory_space<vmem>>, vector<1x64x32xbf16>
    %171 = vector.shape_cast %170 : vector<1x64x32xbf16> to vector<64x32xbf16>
    %cst_72 = arith.constant dense<0.000000e+00> : vector<8x32xf32>
    %172 = tpu.matmul %169, %171, %cst_72 {dimension_numbers = #tpu.dot_dimension_numbers<[1], [0], [0], [1], [0, 0, 1, 1], [], []>} : vector<8x64xbf16>, vector<64x32xbf16>, vector<8x32xf32> -> vector<8x32xf32>
    %c0_73 = arith.constant 0 : index
    %c0_74 = arith.constant 0 : index
    %c0_75 = arith.constant 0 : index
    %173 = vector.load %arg12[%c0_73, %c0_74, %c0_75] : memref<1x1x32xf32, #tpu.memory_space<vmem>>, vector<1x1x32xf32>
    %174 = vector.shape_cast %173 : vector<1x1x32xf32> to vector<1x32xf32>
    %175 = vector.broadcast %174 : vector<1x32xf32> to vector<8x32xf32>
    %176 = arith.addf %172, %175 : vector<8x32xf32>
    %177 = arith.addf %134, %176 : vector<8x32xf32>
    %c0_76 = arith.constant 0 : index
    %c0_77 = arith.constant 0 : index
    %178 = vector.load %arg16[%c0_76, %c0_77] : memref<8x32xf32, #tpu.memory_space<vmem>>, vector<8x32xf32>
    tpu.vector_store %arg16[%c0_76, %c0_77], %177 {strides = array<i32>} : memref<8x32xf32, #tpu.memory_space<vmem>>, vector<8x32xf32>,
    %c1_i32 = arith.constant 1 : i32
    %179 = arith.cmpi eq, %arg1, %c1_i32 : i32
    %180 = arith.extui %179 : i1 to i32
    %c0_i32_78 = arith.constant 0 : i32
    %181 = arith.cmpi ne, %180, %c0_i32_78 : i32
    scf.if %181 {
      %c0_79 = arith.constant 0 : index
      %c0_80 = arith.constant 0 : index
      %182 = vector.load %arg13[%c0_79, %c0_80] : memref<1x32xf32, #tpu.memory_space<vmem>>, vector<1x32xf32>
      %c0_81 = arith.constant 0 : index
      %c0_82 = arith.constant 0 : index
      %183 = vector.load %arg14[%c0_81, %c0_82] : memref<1x32xf32, #tpu.memory_space<vmem>>, vector<1x32xf32>
      %cst_83 = arith.constant dense<0.000000e+00> : vector<8xf32>
      %184 = vector.multi_reduction <add>, %177, %cst_83 [1] : vector<8x32xf32> to vector<8xf32>
      %185 = vector.shape_cast %184 : vector<8xf32> to vector<8x1xf32>
      %cst_84 = arith.constant 3.200000e+01 : f32
      %186 = vector.broadcast %cst_84 : f32 to vector<8x1xf32>
      %187 = arith.divf %185, %186 : vector<8x1xf32>
      %188 = vector.broadcast %187 : vector<8x1xf32> to vector<8x32xf32>
      %189 = arith.subf %177, %188 : vector<8x32xf32>
      %190 = arith.mulf %189, %189 : vector<8x32xf32>
      %cst_85 = arith.constant dense<0.000000e+00> : vector<8xf32>
      %191 = vector.multi_reduction <add>, %190, %cst_85 [1] : vector<8x32xf32> to vector<8xf32>
      %192 = vector.shape_cast %191 : vector<8xf32> to vector<8x1xf32>
      %cst_86 = arith.constant 3.200000e+01 : f32
      %193 = vector.broadcast %cst_86 : f32 to vector<8x1xf32>
      %194 = arith.divf %192, %193 : vector<8x1xf32>
      %cst_87 = arith.constant 9.99999974E-6 : f32
      %195 = vector.broadcast %cst_87 : f32 to vector<8x1xf32>
      %196 = arith.addf %194, %195 : vector<8x1xf32>
      %197 = math.rsqrt %196 : vector<8x1xf32>
      %198 = vector.broadcast %197 : vector<8x1xf32> to vector<8x32xf32>
      %199 = arith.mulf %189, %198 : vector<8x32xf32>
      %200 = vector.broadcast %182 : vector<1x32xf32> to vector<8x32xf32>
      %201 = arith.mulf %199, %200 : vector<8x32xf32>
      %202 = vector.broadcast %183 : vector<1x32xf32> to vector<8x32xf32>
      %203 = arith.addf %201, %202 : vector<8x32xf32>
      %204 = vector.shape_cast %203 : vector<8x32xf32> to vector<1x8x32xf32>
      %c0_88 = arith.constant 0 : index
      %c0_89 = arith.constant 0 : index
      %c0_90 = arith.constant 0 : index
      %205 = vector.load %arg15[%c0_88, %c0_89, %c0_90] : memref<1x8x32xf32, #tpu.memory_space<vmem>>, vector<1x8x32xf32>
      tpu.vector_store %arg15[%c0_88, %c0_89, %c0_90], %204 {strides = array<i32>} : memref<1x8x32xf32, #tpu.memory_space<vmem>>, vector<1x8x32xf32>,
    } else {
    }
    return
  }
  func.func @transform_0(%arg0: i32, %arg1: i32) -> (i32, i32, i32) {
    %c0_i32 = arith.constant 0 : i32
    %c0_i32_0 = arith.constant 0 : i32
    %c0_i32_1 = arith.constant 0 : i32
    return %arg0, %c0_i32, %c0_i32_0 : i32, i32, i32
  }
  func.func @transform_1(%arg0: i32, %arg1: i32) -> (i32, i32, i32) {
    %c0_i32 = arith.constant 0 : i32
    %c0_i32_0 = arith.constant 0 : i32
    %c0_i32_1 = arith.constant 0 : i32
    return %arg1, %c0_i32, %c0_i32_0 : i32, i32, i32
  }
  func.func @transform_2(%arg0: i32, %arg1: i32) -> (i32, i32, i32) {
    %c0_i32 = arith.constant 0 : i32
    %c0_i32_0 = arith.constant 0 : i32
    %c0_i32_1 = arith.constant 0 : i32
    return %arg1, %c0_i32, %c0_i32_0 : i32, i32, i32
  }
  func.func @transform_3(%arg0: i32, %arg1: i32) -> (i32, i32, i32) {
    %c0_i32 = arith.constant 0 : i32
    %c0_i32_0 = arith.constant 0 : i32
    %c0_i32_1 = arith.constant 0 : i32
    return %arg1, %c0_i32, %c0_i32_0 : i32, i32, i32
  }
  func.func @transform_4(%arg0: i32, %arg1: i32) -> (i32, i32, i32, i32) {
    %c0_i32 = arith.constant 0 : i32
    %c0_i32_0 = arith.constant 0 : i32
    %c0_i32_1 = arith.constant 0 : i32
    %c0_i32_2 = arith.constant 0 : i32
    return %arg1, %c0_i32, %c0_i32_0, %c0_i32_1 : i32, i32, i32, i32
  }
  func.func @transform_5(%arg0: i32, %arg1: i32) -> (i32, i32, i32) {
    %c0_i32 = arith.constant 0 : i32
    %c0_i32_0 = arith.constant 0 : i32
    %c0_i32_1 = arith.constant 0 : i32
    return %arg1, %c0_i32, %c0_i32_0 : i32, i32, i32
  }
  func.func @transform_6(%arg0: i32, %arg1: i32) -> (i32, i32, i32) {
    %c0_i32 = arith.constant 0 : i32
    %c0_i32_0 = arith.constant 0 : i32
    %c0_i32_1 = arith.constant 0 : i32
    return %arg1, %c0_i32, %c0_i32_0 : i32, i32, i32
  }
  func.func @transform_7(%arg0: i32, %arg1: i32) -> (i32, i32, i32) {
    %c0_i32 = arith.constant 0 : i32
    %c0_i32_0 = arith.constant 0 : i32
    %c0_i32_1 = arith.constant 0 : i32
    return %arg1, %c0_i32, %c0_i32_0 : i32, i32, i32
  }
  func.func @transform_8(%arg0: i32, %arg1: i32) -> (i32, i32, i32) {
    %c0_i32 = arith.constant 0 : i32
    %c0_i32_0 = arith.constant 0 : i32
    %c0_i32_1 = arith.constant 0 : i32
    return %arg1, %c0_i32, %c0_i32_0 : i32, i32, i32
  }
  func.func @transform_9(%arg0: i32, %arg1: i32) -> (i32, i32, i32) {
    %c0_i32 = arith.constant 0 : i32
    %c0_i32_0 = arith.constant 0 : i32
    %c0_i32_1 = arith.constant 0 : i32
    return %arg1, %c0_i32, %c0_i32_0 : i32, i32, i32
  }
  func.func @transform_10(%arg0: i32, %arg1: i32) -> (i32, i32, i32) {
    %c0_i32 = arith.constant 0 : i32
    %c0_i32_0 = arith.constant 0 : i32
    %c0_i32_1 = arith.constant 0 : i32
    return %arg1, %c0_i32, %c0_i32_0 : i32, i32, i32
  }
  func.func @transform_11(%arg0: i32, %arg1: i32) -> (i32, i32) {
    %c0_i32 = arith.constant 0 : i32
    %c0_i32_0 = arith.constant 0 : i32
    %c0_i32_1 = arith.constant 0 : i32
    return %c0_i32, %c0_i32_0 : i32, i32
  }
  func.func @transform_12(%arg0: i32, %arg1: i32) -> (i32, i32) {
    %c0_i32 = arith.constant 0 : i32
    %c0_i32_0 = arith.constant 0 : i32
    %c0_i32_1 = arith.constant 0 : i32
    return %c0_i32, %c0_i32_0 : i32, i32
  }
  func.func @transform_13(%arg0: i32, %arg1: i32) -> (i32, i32, i32) {
    %c0_i32 = arith.constant 0 : i32
    %c0_i32_0 = arith.constant 0 : i32
    %c0_i32_1 = arith.constant 0 : i32
    return %arg0, %c0_i32, %c0_i32_0 : i32, i32, i32
  }
}

</mosaic_0001>

<llo_original>
// kernel: tpu_custom_call.1
$region0: #{tpu_custom_call.1}
  #allocation0 [shape = 'u32[]', space=smem, size = 0x4, offset = 0x4, fixed_abs, tag = 'smem constant byte address 0x4 - core index']
  #allocation1 [shape = 'u32[144,128]{1,0:T(1,128)}', space=vmem, size = 0x12000, scoped, tag = 'internal scratch']
  #allocation2 [shape = 'f32[8,32]{1,0:T(8,128)}', space=vmem, size = 0x1000, scoped, tag = 'scratch operand']
  %s0 = inlined_call_operand.hbm [shape: f32[2,8,32], index: 0, kind: input, shape index: {}]
  %s1 = inlined_call_operand.vmem [shape: f32[2,1,32], index: 1, kind: input, shape index: {}]
  %s2 = inlined_call_operand.hbm [shape: f32[2,1,32], index: 2, kind: input, shape index: {}]
  %s3 = inlined_call_operand.vmem [shape: bf16[2,32,96], index: 3, kind: input, shape index: {}]
  %s4 = inlined_call_operand.vmem [shape: bf16[2,4,8,32], index: 4, kind: input, shape index: {}]
  %s5 = inlined_call_operand.hbm [shape: f32[2,1,32], index: 5, kind: input, shape index: {}]
  %s6 = inlined_call_operand.hbm [shape: f32[2,1,32], index: 6, kind: input, shape index: {}]
  %s7 = inlined_call_operand.vmem [shape: bf16[2,32,64], index: 7, kind: input, shape index: {}]
  %s8 = inlined_call_operand.hbm [shape: f32[2,1,64], index: 8, kind: input, shape index: {}]
  %s9 = inlined_call_operand.vmem [shape: bf16[2,64,32], index: 9, kind: input, shape index: {}]
  %s10 = inlined_call_operand.vmem [shape: f32[2,1,32], index: 10, kind: input, shape index: {}]
  %s11 = inlined_call_operand.vmem [shape: f32[1,32], index: 11, kind: input, shape index: {}]
  %s12 = inlined_call_operand.vmem [shape: f32[1,32], index: 12, kind: input, shape index: {}]
  %s13 = inlined_call_operand.hbm [shape: f32[2,8,32], index: 13, kind: output, shape index: {}]
  %s14 = sld [smem:[#allocation0]]
  $region113: #{tpu_custom_call.1} parent=0
    _
  %s16 = ssub.s32 1, %s14
  %s17 = scalar_select 0, %s16, %s14
  $region1: #{tpu_custom_call.1} parent=0
    #allocation3 [shape = 'u8[8192]{0}', space=vmem, size = 0x2000, scoped, tag = 'input window, operand 0']
    #allocation4 [shape = 's32[2]{0}', space=sflag, size = 0x8, scoped, tag = 'scoped memory for tpu_custom_call.1']
    #allocation5 [shape = 's32[2]{0}', space=sflag, size = 0x8, scoped, tag = 'scoped memory for tpu_custom_call.1']
    #allocation6 [shape = 'u8[1024]{0}', space=vmem, size = 0x400, scoped, tag = 'input window, operand 2']
    #allocation7 [shape = 's32[2]{0}', space=sflag, size = 0x8, scoped, tag = 'scoped memory for tpu_custom_call.1']
    #allocation8 [shape = 'u8[1024]{0}', space=vmem, size = 0x400, scoped, tag = 'input window, operand 5']
    #allocation9 [shape = 'u8[1024]{0}', space=vmem, size = 0x400, scoped, tag = 'input window, operand 6']
    #allocation10 [shape = 's32[2]{0}', space=sflag, size = 0x8, scoped, tag = 'scoped memory for tpu_custom_call.1']
    #allocation11 [shape = 'u8[1024]{0}', space=vmem, size = 0x400, scoped, tag = 'input window, operand 8']
    #allocation12 [shape = 'u8[8192]{0}', space=vmem, size = 0x2000, scoped, tag = 'output window, operand 0']
    %18 = vsyncpa [#allocation4], 0
    %s19 = scalar_lea.sflag [#allocation4], 1
    %20 = vsyncpa %s19, 0
    %21 = vsyncpa [#allocation7], 0
    %s22 = scalar_lea.sflag [#allocation7], 1
    %23 = vsyncpa %s22, 0
    %24 = vsyncpa [#allocation10], 0
    %s25 = scalar_lea.sflag [#allocation10], 1
    %26 = vsyncpa %s25, 0
    %27 = vsyncpa [#allocation5], 0
    %s28 = scalar_lea.sflag [#allocation5], 1
    %29 = vsyncpa %s28, 0
    loop: start=0, step=1, limit=6
    $region2: #{tpu_custom_call.1} parent=1 // loop_pre_header
      _
    $region3: #{tpu_custom_call.1} parent=1 // loop_header
      %s31 = sphi 0, %s35
      %p32 = scmp.ge.s32.totalorder %s31, 6
      %s38 = sphi 0, %s50
      %s39 = sphi 0, %s46
      %s40 = sphi 0, %s38
      %s41 = sphi 0, %s39
      %s42 = sphi 0, %s40
      %s43 = sphi 0, %s41
      %s53 = sphi 0, %s55
      %s56 = sphi 0, %s53
      %s57 = sphi 0, %s56
      %s73 = sphi 0, %s57
      %s79 = sphi 0, %s81
      %s82 = sphi 0, %s79
      %s83 = sphi 0, %s82
      %s99 = sphi 0, %s83
      %s105 = sphi 0, %s107
      %s108 = sphi 0, %s105
      %s109 = sphi 0, %s108
      %s125 = sphi 0, %s109
      %s131 = sphi 0, %s133
      %s134 = sphi 0, %s131
      %s135 = sphi 0, %s134
      %s151 = sphi 0, %s135
      %s157 = sphi 0, %s159
      %s160 = sphi 0, %s157
      %s161 = sphi 0, %s160
      %s177 = sphi 0, %s161
      %s183 = sphi 0, %s185
      %s186 = sphi 0, %s183
      %s187 = sphi 0, %s186
      %s203 = sphi 0, %s187
      %s209 = sphi 0, %s211
      %s212 = sphi 0, %s209
      %s213 = sphi 0, %s212
      %s229 = sphi 0, %s213
      %s235 = sphi 0, %s237
      %s238 = sphi 0, %s235
      %s239 = sphi 0, %s238
      %s255 = sphi 0, %s239
      %s261 = sphi 0, %s263
      %s264 = sphi 0, %s261
      %s265 = sphi 0, %s264
      %s281 = sphi 0, %s265
      %s287 = sphi 0, %s289
      %s290 = sphi 0, %s287
      %s291 = sphi 0, %s290
      %s307 = sphi 0, %s291
      %s313 = sphi 0, %s315
      %s316 = sphi 0, %s313
      %s317 = sphi 0, %s316
      %s333 = sphi 0, %s317
      %s337 = sphi 0, %s337
      %s339 = sphi 0, %s337
      %s340 = sphi 0, %s339
      %s354 = sphi 0, %s340
      %s358 = sphi 0, %s358
      %s360 = sphi 0, %s358
      %s361 = sphi 0, %s360
      %s375 = sphi 0, %s361
      %s381 = sphi 0, %s383
      %s384 = sphi 0, %s381
      %s385 = sphi 0, %s384
      %s401 = sphi 0, %s385
    $region4: #{tpu_custom_call.1} parent=1 // loop_header_branch
      %34 = sbr.rel (%p32) target = $region8
    $region5: #{tpu_custom_call.1} parent=1 // loop_body
      %s36 = ssub.s32 %s31, 1
      %s37 = ssub.s32 %s31, 2
      %s44 = sadd.s32 1, %s39
      %p45 = scmp.ge.s32.totalorder %s44, 2
      %s46 = scalar_select %p45, 0, %s44
      %s47 = sadd.s32 1, %s38
      %s48 = scalar_select %p45, %s47, %s38
      %p49 = scmp.ge.s32.totalorder %s48, 2
      %s50 = scalar_select %p49, 0, %s48
      %s51 = ssub.s32 %s38, %s50
      %p52 = scmp.eq.s32.totalorder %s51, 0
      %s54 = sadd.s32 %s53, 1
      %s55 = scalar_select %p52, %s53, %s54
      %p58 = pneg %p52
      %p59 = scmp.eq.s32.totalorder %s31, 3
      %p60 = por %p58, %p59
      %p61 = scmp.ne.s32.totalorder %s53, %s56
      %p62 = scmp.eq.s32.totalorder %s31, 0
      %p63 = por %p61, %p62
      %p64 = scmp.ne.s32.totalorder %s53, %s56
      %p65 = scmp.eq.s32.totalorder %s36, 3
      %p66 = por %p64, %p65
      %p67 = scmp.ne.s32.totalorder %s56, %s57
      %p68 = scmp.eq.s32.totalorder %s36, 0
      %p69 = por %p67, %p68
      %p70 = scmp.ne.s32.totalorder %s56, %s57
      %p71 = scmp.eq.s32.totalorder %s37, 3
      %p72 = por %p70, %p71
      %p74 = scmp.ne.s32.totalorder %s57, %s73
      %p75 = scmp.eq.s32.totalorder %s37, 0
      %p76 = por %p74, %p75
      %s77 = ssub.s32 %s39, %s46
      %p78 = scmp.eq.s32.totalorder %s77, 0
      %s80 = sadd.s32 %s79, 1
      %s81 = scalar_select %p78, %s79, %s80
      %p84 = pneg %p78
      %p85 = scmp.eq.s32.totalorder %s31, 3
      %p86 = por %p84, %p85
      %p87 = scmp.ne.s32.totalorder %s79, %s82
      %p88 = scmp.eq.s32.totalorder %s31, 0
      %p89 = por %p87, %p88
      %p90 = scmp.ne.s32.totalorder %s79, %s82
      %p91 = scmp.eq.s32.totalorder %s36, 3
      %p92 = por %p90, %p91
      %p93 = scmp.ne.s32.totalorder %s82, %s83
      %p94 = scmp.eq.s32.totalorder %s36, 0
      %p95 = por %p93, %p94
      %p96 = scmp.ne.s32.totalorder %s82, %s83
      %p97 = scmp.eq.s32.totalorder %s37, 3
      %p98 = por %p96, %p97
      %p100 = scmp.ne.s32.totalorder %s83, %s99
      %p101 = scmp.eq.s32.totalorder %s37, 0
      %p102 = por %p100, %p101
      %s103 = ssub.s32 %s39, %s46
      %p104 = scmp.eq.s32.totalorder %s103, 0
      %s106 = sadd.s32 %s105, 1
      %s107 = scalar_select %p104, %s105, %s106
      %p110 = pneg %p104
      %p111 = scmp.eq.s32.totalorder %s31, 3
      %p112 = por %p110, %p111
      %p113 = scmp.ne.s32.totalorder %s105, %s108
      %p114 = scmp.eq.s32.totalorder %s31, 0
      %p115 = por %p113, %p114
      %p116 = scmp.ne.s32.totalorder %s105, %s108
      %p117 = scmp.eq.s32.totalorder %s36, 3
      %p118 = por %p116, %p117
      %p119 = scmp.ne.s32.totalorder %s108, %s109
      %p120 = scmp.eq.s32.totalorder %s36, 0
      %p121 = por %p119, %p120
      %p122 = scmp.ne.s32.totalorder %s108, %s109
      %p123 = scmp.eq.s32.totalorder %s37, 3
      %p124 = por %p122, %p123
      %p126 = scmp.ne.s32.totalorder %s109, %s125
      %p127 = scmp.eq.s32.totalorder %s37, 0
      %p128 = por %p126, %p127
      %s129 = ssub.s32 %s39, %s46
      %p130 = scmp.eq.s32.totalorder %s129, 0
      %s132 = sadd.s32 %s131, 1
      %s133 = scalar_select %p130, %s131, %s132
      %p136 = pneg %p130
      %p137 = scmp.eq.s32.totalorder %s31, 3
      %p138 = por %p136, %p137
      %p139 = scmp.ne.s32.totalorder %s131, %s134
      %p140 = scmp.eq.s32.totalorder %s31, 0
      %p141 = por %p139, %p140
      %p142 = scmp.ne.s32.totalorder %s131, %s134
      %p143 = scmp.eq.s32.totalorder %s36, 3
      %p144 = por %p142, %p143
      %p145 = scmp.ne.s32.totalorder %s134, %s135
      %p146 = scmp.eq.s32.totalorder %s36, 0
      %p147 = por %p145, %p146
      %p148 = scmp.ne.s32.totalorder %s134, %s135
      %p149 = scmp.eq.s32.totalorder %s37, 3
      %p150 = por %p148, %p149
      %p152 = scmp.ne.s32.totalorder %s135, %s151
      %p153 = scmp.eq.s32.totalorder %s37, 0
      %p154 = por %p152, %p153
      %s155 = ssub.s32 %s39, %s46
      %p156 = scmp.eq.s32.totalorder %s155, 0
      %s158 = sadd.s32 %s157, 1
      %s159 = scalar_select %p156, %s157, %s158
      %p162 = pneg %p156
      %p163 = scmp.eq.s32.totalorder %s31, 3
      %p164 = por %p162, %p163
      %p165 = scmp.ne.s32.totalorder %s157, %s160
      %p166 = scmp.eq.s32.totalorder %s31, 0
      %p167 = por %p165, %p166
      %p168 = scmp.ne.s32.totalorder %s157, %s160
      %p169 = scmp.eq.s32.totalorder %s36, 3
      %p170 = por %p168, %p169
      %p171 = scmp.ne.s32.totalorder %s160, %s161
      %p172 = scmp.eq.s32.totalorder %s36, 0
      %p173 = por %p171, %p172
      %p174 = scmp.ne.s32.totalorder %s160, %s161
      %p175 = scmp.eq.s32.totalorder %s37, 3
      %p176 = por %p174, %p175
      %p178 = scmp.ne.s32.totalorder %s161, %s177
      %p179 = scmp.eq.s32.totalorder %s37, 0
      %p180 = por %p178, %p179
      %s181 = ssub.s32 %s39, %s46
      %p182 = scmp.eq.s32.totalorder %s181, 0
      %s184 = sadd.s32 %s183, 1
      %s185 = scalar_select %p182, %s183, %s184
      %p188 = pneg %p182
      %p189 = scmp.eq.s32.totalorder %s31, 3
      %p190 = por %p188, %p189
      %p191 = scmp.ne.s32.totalorder %s183, %s186
      %p192 = scmp.eq.s32.totalorder %s31, 0
      %p193 = por %p191, %p192
      %p194 = scmp.ne.s32.totalorder %s183, %s186
      %p195 = scmp.eq.s32.totalorder %s36, 3
      %p196 = por %p194, %p195
      %p197 = scmp.ne.s32.totalorder %s186, %s187
      %p198 = scmp.eq.s32.totalorder %s36, 0
      %p199 = por %p197, %p198
      %p200 = scmp.ne.s32.totalorder %s186, %s187
      %p201 = scmp.eq.s32.totalorder %s37, 3
      %p202 = por %p200, %p201
      %p204 = scmp.ne.s32.totalorder %s187, %s203
      %p205 = scmp.eq.s32.totalorder %s37, 0
      %p206 = por %p204, %p205
      %s207 = ssub.s32 %s39, %s46
      %p208 = scmp.eq.s32.totalorder %s207, 0
      %s210 = sadd.s32 %s209, 1
      %s211 = scalar_select %p208, %s209, %s210
      %p214 = pneg %p208
      %p215 = scmp.eq.s32.totalorder %s31, 3
      %p216 = por %p214, %p215
      %p217 = scmp.ne.s32.totalorder %s209, %s212
      %p218 = scmp.eq.s32.totalorder %s31, 0
      %p219 = por %p217, %p218
      %p220 = scmp.ne.s32.totalorder %s209, %s212
      %p221 = scmp.eq.s32.totalorder %s36, 3
      %p222 = por %p220, %p221
      %p223 = scmp.ne.s32.totalorder %s212, %s213
      %p224 = scmp.eq.s32.totalorder %s36, 0
      %p225 = por %p223, %p224
      %p226 = scmp.ne.s32.totalorder %s212, %s213
      %p227 = scmp.eq.s32.totalorder %s37, 3
      %p228 = por %p226, %p227
      %p230 = scmp.ne.s32.totalorder %s213, %s229
      %p231 = scmp.eq.s32.totalorder %s37, 0
      %p232 = por %p230, %p231
      %s233 = ssub.s32 %s39, %s46
      %p234 = scmp.eq.s32.totalorder %s233, 0
      %s236 = sadd.s32 %s235, 1
      %s237 = scalar_select %p234, %s235, %s236
      %p240 = pneg %p234
      %p241 = scmp.eq.s32.totalorder %s31, 3
      %p242 = por %p240, %p241
      %p243 = scmp.ne.s32.totalorder %s235, %s238
      %p244 = scmp.eq.s32.totalorder %s31, 0
      %p245 = por %p243, %p244
      %p246 = scmp.ne.s32.totalorder %s235, %s238
      %p247 = scmp.eq.s32.totalorder %s36, 3
      %p248 = por %p246, %p247
      %p249 = scmp.ne.s32.totalorder %s238, %s239
      %p250 = scmp.eq.s32.totalorder %s36, 0
      %p251 = por %p249, %p250
      %p252 = scmp.ne.s32.totalorder %s238, %s239
      %p253 = scmp.eq.s32.totalorder %s37, 3
      %p254 = por %p252, %p253
      %p256 = scmp.ne.s32.totalorder %s239, %s255
      %p257 = scmp.eq.s32.totalorder %s37, 0
      %p258 = por %p256, %p257
      %s259 = ssub.s32 %s39, %s46
      %p260 = scmp.eq.s32.totalorder %s259, 0
      %s262 = sadd.s32 %s261, 1
      %s263 = scalar_select %p260, %s261, %s262
      %p266 = pneg %p260
      %p267 = scmp.eq.s32.totalorder %s31, 3
      %p268 = por %p266, %p267
      %p269 = scmp.ne.s32.totalorder %s261, %s264
      %p270 = scmp.eq.s32.totalorder %s31, 0
      %p271 = por %p269, %p270
      %p272 = scmp.ne.s32.totalorder %s261, %s264
      %p273 = scmp.eq.s32.totalorder %s36, 3
      %p274 = por %p272, %p273
      %p275 = scmp.ne.s32.totalorder %s264, %s265
      %p276 = scmp.eq.s32.totalorder %s36, 0
      %p277 = por %p275, %p276
      %p278 = scmp.ne.s32.totalorder %s264, %s265
      %p279 = scmp.eq.s32.totalorder %s37, 3
      %p280 = por %p278, %p279
      %p282 = scmp.ne.s32.totalorder %s265, %s281
      %p283 = scmp.eq.s32.totalorder %s37, 0
      %p284 = por %p282, %p283
      %s285 = ssub.s32 %s39, %s46
      %p286 = scmp.eq.s32.totalorder %s285, 0
      %s288 = sadd.s32 %s287, 1
      %s289 = scalar_select %p286, %s287, %s288
      %p292 = pneg %p286
      %p293 = scmp.eq.s32.totalorder %s31, 3
      %p294 = por %p292, %p293
      %p295 = scmp.ne.s32.totalorder %s287, %s290
      %p296 = scmp.eq.s32.totalorder %s31, 0
      %p297 = por %p295, %p296
      %p298 = scmp.ne.s32.totalorder %s287, %s290
      %p299 = scmp.eq.s32.totalorder %s36, 3
      %p300 = por %p298, %p299
      %p301 = scmp.ne.s32.totalorder %s290, %s291
      %p302 = scmp.eq.s32.totalorder %s36, 0
      %p303 = por %p301, %p302
      %p304 = scmp.ne.s32.totalorder %s290, %s291
      %p305 = scmp.eq.s32.totalorder %s37, 3
      %p306 = por %p304, %p305
      %p308 = scmp.ne.s32.totalorder %s291, %s307
      %p309 = scmp.eq.s32.totalorder %s37, 0
      %p310 = por %p308, %p309
      %s311 = ssub.s32 %s39, %s46
      %p312 = scmp.eq.s32.totalorder %s311, 0
      %s314 = sadd.s32 %s313, 1
      %s315 = scalar_select %p312, %s313, %s314
      %p318 = pneg %p312
      %p319 = scmp.eq.s32.totalorder %s31, 3
      %p320 = por %p318, %p319
      %p321 = scmp.ne.s32.totalorder %s313, %s316
      %p322 = scmp.eq.s32.totalorder %s31, 0
      %p323 = por %p321, %p322
      %p324 = scmp.ne.s32.totalorder %s313, %s316
      %p325 = scmp.eq.s32.totalorder %s36, 3
      %p326 = por %p324, %p325
      %p327 = scmp.ne.s32.totalorder %s316, %s317
      %p328 = scmp.eq.s32.totalorder %s36, 0
      %p329 = por %p327, %p328
      %p330 = scmp.ne.s32.totalorder %s316, %s317
      %p331 = scmp.eq.s32.totalorder %s37, 3
      %p332 = por %p330, %p331
      %p334 = scmp.ne.s32.totalorder %s317, %s333
      %p335 = scmp.eq.s32.totalorder %s37, 0
      %p336 = por %p334, %p335
      %s338 = sadd.s32 %s337, 1
      %p341 = scmp.eq.s32.totalorder %s31, 3
      %p342 = scmp.ne.s32.totalorder %s337, %s339
      %p343 = scmp.eq.s32.totalorder %s31, 0
      %p344 = por %p342, %p343
      %p345 = scmp.ne.s32.totalorder %s337, %s339
      %p346 = scmp.eq.s32.totalorder %s36, 3
      %p347 = por %p345, %p346
      %p348 = scmp.ne.s32.totalorder %s339, %s340
      %p349 = scmp.eq.s32.totalorder %s36, 0
      %p350 = por %p348, %p349
      %p351 = scmp.ne.s32.totalorder %s339, %s340
      %p352 = scmp.eq.s32.totalorder %s37, 3
      %p353 = por %p351, %p352
      %p355 = scmp.ne.s32.totalorder %s340, %s354
      %p356 = scmp.eq.s32.totalorder %s37, 0
      %p357 = por %p355, %p356
      %s359 = sadd.s32 %s358, 1
      %p362 = scmp.eq.s32.totalorder %s31, 3
      %p363 = scmp.ne.s32.totalorder %s358, %s360
      %p364 = scmp.eq.s32.totalorder %s31, 0
      %p365 = por %p363, %p364
      %p366 = scmp.ne.s32.totalorder %s358, %s360
      %p367 = scmp.eq.s32.totalorder %s36, 3
      %p368 = por %p366, %p367
      %p369 = scmp.ne.s32.totalorder %s360, %s361
      %p370 = scmp.eq.s32.totalorder %s36, 0
      %p371 = por %p369, %p370
      %p372 = scmp.ne.s32.totalorder %s360, %s361
      %p373 = scmp.eq.s32.totalorder %s37, 3
      %p374 = por %p372, %p373
      %p376 = scmp.ne.s32.totalorder %s361, %s375
      %p377 = scmp.eq.s32.totalorder %s37, 0
      %p378 = por %p376, %p377
      %s379 = ssub.s32 %s38, %s50
      %p380 = scmp.eq.s32.totalorder %s379, 0
      %s382 = sadd.s32 %s381, 1
      %s383 = scalar_select %p380, %s381, %s382
      %p386 = pneg %p380
      %p387 = scmp.eq.s32.totalorder %s31, 3
      %p388 = por %p386, %p387
      %p389 = scmp.ne.s32.totalorder %s381, %s384
      %p390 = scmp.eq.s32.totalorder %s31, 0
      %p391 = por %p389, %p390
      %p392 = scmp.ne.s32.totalorder %s381, %s384
      %p393 = scmp.eq.s32.totalorder %s36, 3
      %p394 = por %p392, %p393
      %p395 = scmp.ne.s32.totalorder %s384, %s385
      %p396 = scmp.eq.s32.totalorder %s36, 0
      %p397 = por %p395, %p396
      %p398 = scmp.ne.s32.totalorder %s384, %s385
      %p399 = scmp.eq.s32.totalorder %s37, 3
      %p400 = por %p398, %p399
      %p402 = scmp.ne.s32.totalorder %s385, %s401
      %p403 = scmp.eq.s32.totalorder %s37, 0
      %p404 = por %p402, %p403
      %p405 = scmp.le.s32.totalorder 1, %s31
      %p406 = scmp.lt.s32.totalorder %s31, 5
      %p407 = pnand %p405, %p406
      %p408 = pneg %p407
      // Predicated region
      $region9: #{tpu_custom_call.1} parent=5 // pred_check
        _
      $region10: #{tpu_custom_call.1} parent=5 // pred_check_branch
        %410 = sbr.rel (%p407) target = $region12
      $region11: #{tpu_custom_call.1} parent=5 // pred_region
        %s411 = ssub.s32 %s31, 1
        // Predicated region
        $region13: #{tpu_custom_call.1} parent=11 // pred_check
          %p412 = pneg %p350
        $region14: #{tpu_custom_call.1} parent=11 // pred_check_branch
          %414 = sbr.rel (%p412) target = $region16
        $region15: #{tpu_custom_call.1} parent=11 // pred_region
          _
        $region16: #{tpu_custom_call.1} parent=11 // pred_fallthru
          _
        // Predicated region
        $region17: #{tpu_custom_call.1} parent=11 // pred_check
          %p415 = pneg %p371
        $region18: #{tpu_custom_call.1} parent=11 // pred_check_branch
          %417 = sbr.rel (%p415) target = $region20
        $region19: #{tpu_custom_call.1} parent=11 // pred_region
          _
        $region20: #{tpu_custom_call.1} parent=11 // pred_fallthru
          _
      $region12: #{tpu_custom_call.1} parent=5 // pred_fallthru
        _
      %p418 = scmp.lt.s32.totalorder %s31, 4
      // Predicated region
      $region21: #{tpu_custom_call.1} parent=5 // pred_check
        %p419 = pneg %p418
      $region22: #{tpu_custom_call.1} parent=5 // pred_check_branch
        %421 = sbr.rel (%p419) target = $region24
      $region23: #{tpu_custom_call.1} parent=5 // pred_region
        // Predicated region
        $region25: #{tpu_custom_call.1} parent=23 // pred_check
          %p422 = pneg %p63
        $region26: #{tpu_custom_call.1} parent=23 // pred_check_branch
          %424 = sbr.rel (%p422) target = $region28
        $region27: #{tpu_custom_call.1} parent=23 // pred_region
          %s425 = sand.u32 %s53, 1
          %s426 = scalar_lea.sflag [#allocation4], %s425
          %s427 = sand.u32 %s53, 1
          %s428 = smul.addr %s427, 8
          %s429 = scalar_lea.vmem [#allocation3], %s428
          %s431 = ssub.s32 128, 128
          %432 = vsyncadd %s426, %s431
          %s433 = smul.addr %s38, 128
          %s434 = scalar_lea.hbm %s0, %s433
          %s436 = sshll.u32 %s429, 4
          %s437 = int_to_ptr.vmem [resolvable:$true] %s436
          %439 = dma.hbm_to_vmem [thread:$0]  %s434, 128, %s437, %s426
        $region28: #{tpu_custom_call.1} parent=23 // pred_fallthru
          _
        // Predicated region
        $region29: #{tpu_custom_call.1} parent=23 // pred_check
          %p440 = pneg %p89
        $region30: #{tpu_custom_call.1} parent=23 // pred_check_branch
          %442 = sbr.rel (%p440) target = $region32
        $region31: #{tpu_custom_call.1} parent=23 // pred_region
          %p443 = scmp.lt.s32.totalorder %s39, 1
          %s444 = scalar_select %p443, %s39, 1
          %s445 = scalar_lea.vmem %s1, %s444
        $region32: #{tpu_custom_call.1} parent=23 // pred_fallthru
          _
        // Predicated region
        $region33: #{tpu_custom_call.1} parent=23 // pred_check
          %p446 = pneg %p115
        $region34: #{tpu_custom_call.1} parent=23 // pred_check_branch
          %448 = sbr.rel (%p446) target = $region36
        $region35: #{tpu_custom_call.1} parent=23 // pred_region
          %s449 = sand.u32 %s31, 1
          %s450 = scalar_lea.sflag [#allocation7], %s449
          %s451 = sand.u32 %s105, 1
          %s452 = scalar_lea.vmem [#allocation6], %s451
          %s454 = ssub.s32 16, 16
          %455 = vsyncadd %s450, %s454
          %s456 = smul.addr %s39, 16
          %s457 = scalar_lea.hbm %s2, %s456
          %s459 = sshll.u32 %s452, 4
          %s460 = int_to_ptr.vmem [resolvable:$true] %s459
          %462 = dma.hbm_to_vmem [thread:$0]  %s457, 16, %s460, %s450
        $region36: #{tpu_custom_call.1} parent=23 // pred_fallthru
          _
        // Predicated region
        $region37: #{tpu_custom_call.1} parent=23 // pred_check
          %p463 = pneg %p141
        $region38: #{tpu_custom_call.1} parent=23 // pred_check_branch
          %465 = sbr.rel (%p463) target = $region40
        $region39: #{tpu_custom_call.1} parent=23 // pred_region
          %p466 = scmp.lt.s32.totalorder %s39, 1
          %s467 = scalar_select %p466, %s39, 1
          %s468 = smul.addr %s467, 4
          %s469 = smul.addr %s468, 4
          %s470 = scalar_lea.vmem %s3, %s469
        $region40: #{tpu_custom_call.1} parent=23 // pred_fallthru
          _
        // Predicated region
        $region41: #{tpu_custom_call.1} parent=23 // pred_check
          %p471 = pneg %p167
        $region42: #{tpu_custom_call.1} parent=23 // pred_check_branch
          %473 = sbr.rel (%p471) target = $region44
        $region43: #{tpu_custom_call.1} parent=23 // pred_region
          %p474 = scmp.lt.s32.totalorder %s39, 1
          %s475 = scalar_select %p474, %s39, 1
          %s476 = smul.addr %s475, 4
          %s477 = smul.addr %s476, 4
          %s478 = scalar_lea.vmem %s4, %s477
        $region44: #{tpu_custom_call.1} parent=23 // pred_fallthru
          _
        // Predicated region
        $region45: #{tpu_custom_call.1} parent=23 // pred_check
          %p479 = pneg %p193
        $region46: #{tpu_custom_call.1} parent=23 // pred_check_branch
          %481 = sbr.rel (%p479) target = $region48
        $region47: #{tpu_custom_call.1} parent=23 // pred_region
          %s482 = sand.u32 %s31, 1
          %s483 = scalar_lea.sflag [#allocation7], %s482
          %s484 = sand.u32 %s183, 1
          %s485 = scalar_lea.vmem [#allocation8], %s484
          %s487 = ssub.s32 16, 16
          %488 = vsyncadd %s483, %s487
          %s489 = smul.addr %s39, 16
          %s490 = scalar_lea.hbm %s5, %s489
          %s492 = sshll.u32 %s485, 4
          %s493 = int_to_ptr.vmem [resolvable:$true] %s492
          %495 = dma.hbm_to_vmem [thread:$0]  %s490, 16, %s493, %s483
        $region48: #{tpu_custom_call.1} parent=23 // pred_fallthru
          _
        // Predicated region
        $region49: #{tpu_custom_call.1} parent=23 // pred_check
          %p496 = pneg %p219
        $region50: #{tpu_custom_call.1} parent=23 // pred_check_branch
          %498 = sbr.rel (%p496) target = $region52
        $region51: #{tpu_custom_call.1} parent=23 // pred_region
          %s499 = sand.u32 %s31, 1
          %s500 = scalar_lea.sflag [#allocation10], %s499
          %s501 = sand.u32 %s209, 1
          %s502 = scalar_lea.vmem [#allocation9], %s501
          %s504 = ssub.s32 16, 16
          %505 = vsyncadd %s500, %s504
          %s506 = smul.addr %s39, 16
          %s507 = scalar_lea.hbm %s6, %s506
          %s509 = sshll.u32 %s502, 4
          %s510 = int_to_ptr.vmem [resolvable:$true] %s509
          %512 = dma.hbm_to_vmem [thread:$0]  %s507, 16, %s510, %s500
        $region52: #{tpu_custom_call.1} parent=23 // pred_fallthru
          _
        // Predicated region
        $region53: #{tpu_custom_call.1} parent=23 // pred_check
          %p513 = pneg %p245
        $region54: #{tpu_custom_call.1} parent=23 // pred_check_branch
          %515 = sbr.rel (%p513) target = $region56
        $region55: #{tpu_custom_call.1} parent=23 // pred_region
          %p516 = scmp.lt.s32.totalorder %s39, 1
          %s517 = scalar_select %p516, %s39, 1
          %s518 = smul.addr %s517, 4
          %s519 = smul.addr %s518, 4
          %s520 = scalar_lea.vmem %s7, %s519
        $region56: #{tpu_custom_call.1} parent=23 // pred_fallthru
          _
        // Predicated region
        $region57: #{tpu_custom_call.1} parent=23 // pred_check
          %p521 = pneg %p271
        $region58: #{tpu_custom_call.1} parent=23 // pred_check_branch
          %523 = sbr.rel (%p521) target = $region60
        $region59: #{tpu_custom_call.1} parent=23 // pred_region
          %s524 = sand.u32 %s31, 1
          %s525 = scalar_lea.sflag [#allocation10], %s524
          %s526 = sand.u32 %s261, 1
          %s527 = scalar_lea.vmem [#allocation11], %s526
          %s529 = ssub.s32 16, 16
          %530 = vsyncadd %s525, %s529
          %s531 = smul.addr %s39, 16
          %s532 = scalar_lea.hbm %s8, %s531
          %s534 = sshll.u32 %s527, 4
          %s535 = int_to_ptr.vmem [resolvable:$true] %s534
          %537 = dma.hbm_to_vmem [thread:$0]  %s532, 16, %s535, %s525
        $region60: #{tpu_custom_call.1} parent=23 // pred_fallthru
          _
        // Predicated region
        $region61: #{tpu_custom_call.1} parent=23 // pred_check
          %p538 = pneg %p297
        $region62: #{tpu_custom_call.1} parent=23 // pred_check_branch
          %540 = sbr.rel (%p538) target = $region64
        $region63: #{tpu_custom_call.1} parent=23 // pred_region
          %p541 = scmp.lt.s32.totalorder %s39, 1
          %s542 = scalar_select %p541, %s39, 1
          %s543 = smul.addr %s542, 8
          %s544 = smul.addr %s543, 4
          %s545 = scalar_lea.vmem %s9, %s544
        $region64: #{tpu_custom_call.1} parent=23 // pred_fallthru
          _
        // Predicated region
        $region65: #{tpu_custom_call.1} parent=23 // pred_check
          %p546 = pneg %p323
        $region66: #{tpu_custom_call.1} parent=23 // pred_check_branch
          %548 = sbr.rel (%p546) target = $region68
        $region67: #{tpu_custom_call.1} parent=23 // pred_region
          %p549 = scmp.lt.s32.totalorder %s39, 1
          %s550 = scalar_select %p549, %s39, 1
          %s551 = scalar_lea.vmem %s10, %s550
        $region68: #{tpu_custom_call.1} parent=23 // pred_fallthru
          _
      $region24: #{tpu_custom_call.1} parent=5 // pred_fallthru
        _
      %p552 = scmp.le.s32.totalorder 1, %s31
      %p553 = scmp.lt.s32.totalorder %s31, 5
      %p554 = pnand %p552, %p553
      %p555 = pneg %p554
      // Predicated region
      $region69: #{tpu_custom_call.1} parent=5 // pred_check
        _
      $region70: #{tpu_custom_call.1} parent=5 // pred_check_branch
        %557 = sbr.rel (%p554) target = $region72
      $region71: #{tpu_custom_call.1} parent=5 // pred_region
        %s558 = ssub.s32 %s31, 1
        %s559 = sand.u32 %s56, 1
        %s560 = scalar_lea.sflag [#allocation4], %s559
        %s561 = sand.u32 %s56, 1
        %s562 = smul.addr %s561, 8
        %s563 = scalar_lea.vmem [#allocation3], %s562
        // Predicated region
        $region73: #{tpu_custom_call.1} parent=71 // pred_check
          %p564 = pneg %p69
        $region74: #{tpu_custom_call.1} parent=71 // pred_check_branch
          %566 = sbr.rel (%p564) target = $region76
        $region75: #{tpu_custom_call.1} parent=71 // pred_region
          %567 = dma.done %s560, 128
        $region76: #{tpu_custom_call.1} parent=71 // pred_fallthru
          _
        %s568 = sand.u32 %s36, 1
        %s569 = scalar_lea.sflag [#allocation7], %s568
        %s570 = sand.u32 %s108, 1
        %s571 = scalar_lea.vmem [#allocation6], %s570
        // Predicated region
        $region77: #{tpu_custom_call.1} parent=71 // pred_check
          %p572 = pneg %p121
        $region78: #{tpu_custom_call.1} parent=71 // pred_check_branch
          %574 = sbr.rel (%p572) target = $region80
        $region79: #{tpu_custom_call.1} parent=71 // pred_region
          %575 = dma.done %s569, 16
        $region80: #{tpu_custom_call.1} parent=71 // pred_fallthru
          _
        %s576 = sand.u32 %s36, 1
        %s577 = scalar_lea.sflag [#allocation7], %s576
        %s578 = sand.u32 %s186, 1
        %s579 = scalar_lea.vmem [#allocation8], %s578
        // Predicated region
        $region81: #{tpu_custom_call.1} parent=71 // pred_check
          %p580 = pneg %p199
        $region82: #{tpu_custom_call.1} parent=71 // pred_check_branch
          %582 = sbr.rel (%p580) target = $region84
        $region83: #{tpu_custom_call.1} parent=71 // pred_region
          %583 = dma.done %s577, 16
        $region84: #{tpu_custom_call.1} parent=71 // pred_fallthru
          _
        %s584 = sand.u32 %s36, 1
        %s585 = scalar_lea.sflag [#allocation10], %s584
        %s586 = sand.u32 %s212, 1
        %s587 = scalar_lea.vmem [#allocation9], %s586
        // Predicated region
        $region85: #{tpu_custom_call.1} parent=71 // pred_check
          %p588 = pneg %p225
        $region86: #{tpu_custom_call.1} parent=71 // pred_check_branch
          %590 = sbr.rel (%p588) target = $region88
        $region87: #{tpu_custom_call.1} parent=71 // pred_region
          %591 = dma.done %s585, 16
        $region88: #{tpu_custom_call.1} parent=71 // pred_fallthru
          _
        %s592 = sand.u32 %s36, 1
        %s593 = scalar_lea.sflag [#allocation10], %s592
        %s594 = sand.u32 %s264, 1
        %s595 = scalar_lea.vmem [#allocation11], %s594
        // Predicated region
        $region89: #{tpu_custom_call.1} parent=71 // pred_check
          %p596 = pneg %p277
        $region90: #{tpu_custom_call.1} parent=71 // pred_check_branch
          %598 = sbr.rel (%p596) target = $region92
        $region91: #{tpu_custom_call.1} parent=71 // pred_region
          %599 = dma.done %s593, 16
        $region92: #{tpu_custom_call.1} parent=71 // pred_fallthru
          _
        %s600 = sand.u32 %s56, 1
        %s601 = scalar_lea.sflag [#allocation4], %s600
        %s602 = sand.u32 %s56, 1
        %s603 = smul.addr %s602, 8
        %s604 = scalar_lea.vmem [#allocation3], %s603
        %p605 = pneg %p69
        %p606 = pneg %p66
        %p607 = scmp.lt.s32.totalorder %s41, 1
        %s608 = scalar_select %p607, %s41, 1
        %s609 = scalar_lea.vmem %s1, %s608
        %p610 = pneg %p95
        %p611 = pneg %p92
        %s612 = sand.u32 %s36, 1
        %s613 = scalar_lea.sflag [#allocation7], %s612
        %s614 = sand.u32 %s108, 1
        %s615 = scalar_lea.vmem [#allocation6], %s614
        %p616 = pneg %p121
        %p617 = pneg %p118
        %p618 = scmp.lt.s32.totalorder %s41, 1
        %s619 = scalar_select %p618, %s41, 1
        %s620 = smul.addr %s619, 4
        %s621 = smul.addr %s620, 4
        %s622 = scalar_lea.vmem %s3, %s621
        %p623 = pneg %p147
        %p624 = pneg %p144
        %p625 = scmp.lt.s32.totalorder %s41, 1
        %s626 = scalar_select %p625, %s41, 1
        %s627 = smul.addr %s626, 4
        %s628 = smul.addr %s627, 4
        %s629 = scalar_lea.vmem %s4, %s628
        %p630 = pneg %p173
        %p631 = pneg %p170
        %s632 = sand.u32 %s36, 1
        %s633 = scalar_lea.sflag [#allocation7], %s632
        %s634 = sand.u32 %s186, 1
        %s635 = scalar_lea.vmem [#allocation8], %s634
        %p636 = pneg %p199
        %p637 = pneg %p196
        %s638 = sand.u32 %s36, 1
        %s639 = scalar_lea.sflag [#allocation10], %s638
        %s640 = sand.u32 %s212, 1
        %s641 = scalar_lea.vmem [#allocation9], %s640
        %p642 = pneg %p225
        %p643 = pneg %p222
        %p644 = scmp.lt.s32.totalorder %s41, 1
        %s645 = scalar_select %p644, %s41, 1
        %s646 = smul.addr %s645, 4
        %s647 = smul.addr %s646, 4
        %s648 = scalar_lea.vmem %s7, %s647
        %p649 = pneg %p251
        %p650 = pneg %p248
        %s651 = sand.u32 %s36, 1
        %s652 = scalar_lea.sflag [#allocation10], %s651
        %s653 = sand.u32 %s264, 1
        %s654 = scalar_lea.vmem [#allocation11], %s653
        %p655 = pneg %p277
        %p656 = pneg %p274
        %p657 = scmp.lt.s32.totalorder %s41, 1
        %s658 = scalar_select %p657, %s41, 1
        %s659 = smul.addr %s658, 8
        %s660 = smul.addr %s659, 4
        %s661 = scalar_lea.vmem %s9, %s660
        %p662 = pneg %p303
        %p663 = pneg %p300
        %p664 = scmp.lt.s32.totalorder %s41, 1
        %s665 = scalar_select %p664, %s41, 1
        %s666 = scalar_lea.vmem %s10, %s665
        %p667 = pneg %p329
        %p668 = pneg %p326
        %p669 = pneg %p350
        %p670 = pneg %p347
        %p671 = pneg %p371
        %p672 = pneg %p368
        %p673 = pneg %p397
        %p674 = pneg %p394
        %s675 = sand.u32 %s384, 1
        %s676 = scalar_lea.sflag [#allocation5], %s675
        %s677 = sand.u32 %s384, 1
        %s678 = smul.addr %s677, 8
        %s679 = scalar_lea.vmem [#allocation12], %s678
        %p680 = scmp.lt.s32.totalorder %s41, 1
        %s681 = scalar_select %p680, %s41, 1
        %s682 = scalar_lea.vmem %s1, %s681
        %p683 = scmp.lt.s32.totalorder %s41, 1
        %s684 = scalar_select %p683, %s41, 1
        %s685 = smul.addr %s684, 4
        %s686 = smul.addr %s685, 4
        %s687 = scalar_lea.vmem %s3, %s686
        %p688 = scmp.lt.s32.totalorder %s41, 1
        %s689 = scalar_select %p688, %s41, 1
        %s690 = smul.addr %s689, 4
        %s691 = smul.addr %s690, 4
        %s692 = scalar_lea.vmem %s4, %s691
        %p693 = scmp.lt.s32.totalorder %s41, 1
        %s694 = scalar_select %p693, %s41, 1
        %s695 = smul.addr %s694, 4
        %s696 = smul.addr %s695, 4
        %s697 = scalar_lea.vmem %s7, %s696
        %p698 = scmp.lt.s32.totalorder %s41, 1
        %s699 = scalar_select %p698, %s41, 1
        %s700 = smul.addr %s699, 8
        %s701 = smul.addr %s700, 4
        %s702 = scalar_lea.vmem %s9, %s701
        %p703 = scmp.lt.s32.totalorder %s41, 1
        %s704 = scalar_select %p703, %s41, 1
        %s705 = scalar_lea.vmem %s10, %s704
        %p707 = scmp.eq.s32.totalorder %s41, 0
        // Predicated region
        $region93: #{tpu_custom_call.1} parent=71 // pred_check
          %p708 = pneg %p707
        $region94: #{tpu_custom_call.1} parent=71 // pred_check_branch
          %710 = sbr.rel (%p708) target = $region96
        $region95: #{tpu_custom_call.1} parent=71 // pred_region
          %v711 = vld [vmem:[%s563] sm:$0xff]
          %vm712 = vcmask 261120
          %713 = vst.msk [vmem:[#allocation2] sm:$0xff] %vm712, %v711
        $region96: #{tpu_custom_call.1} parent=71 // pred_fallthru
          _
        %v714 = vld [vmem:[#allocation2] sm:$0xff]
        %v715 = vld [vmem:[%s682] sm:$0x1]
        %v716 = vld [vmem:[%s571] sm:$0x1]
        %vm717 = vcmask 261120
        %v718 = vsel %vm717, %v714, 0.0
        %719 = vadd.xlane.f32.xlu0 %v718
        %v720 = vpop.xlane.xlu0 %719
        %v721 = vrcp.pop 32.0
        %v722 = vmul.f32 %v720, %v721
        %v723 = vsub.f32 %v714, %v722
        %v724 = vmul.f32 %v723, %v723
        %v725 = vsel %vm717, %v724, 0.0
        %726 = vadd.xlane.f32.xlu0 %v725
        %v727 = vpop.xlane.xlu0 %726
        %v728 = vmul.f32 %v727, %v721
        %v729 = vadd.f32 %v728, 1e-05
        %v730 = vrsqrt.pop %v729
        %v731 = vmul.f32 %v723, %v730
        %v733 = vlaneseq
        %v734 = vshrl.u32 %v733, 7
        %v735 = vsub.s32 0, %v734
        %v736 = vrot.slane %v715, %v735
        %v738 = vmul.f32 %v731, %v736
        %v740 = vlaneseq
        %v741 = vshrl.u32 %v740, 7
        %v742 = vsub.s32 0, %v741
        %v743 = vrot.slane %v716, %v742
        %v745 = vadd.f32 %v738, %v743
        %v746 = vpack.c.bf16 %v745, %v745
        %v747 = vld [vmem:[%s687] sm:$0xf]
        %v748 = vld [vmem:[%s687 + $0x4] sm:$0xf]
        %v749 = vld [vmem:[%s687 + $0x8] sm:$0xf]
        %v750 = vld [vmem:[%s687 + $0xc] sm:$0xf]
        %v755 = vunpack.c.l.b16 %v747
        %v756 = vunpack.c.l.b16 %v748
        %v757 = vunpack.c.l.b16 %v749
        %v758 = vunpack.c.l.b16 %v750
        %v759 = vpack.c.b16 %v756, %v755
        %v760 = vpack.c.b16 %v758, %v757
        %v764 = vsel %vm717, %v746, 0
        %766 = vmatprep.subr.bf16.mxu0 0
        %767 = vmatpush1.bf16.msra.mxu0 %v759
        %768 = vmatprep.subr.bf16.mxu0 0
        %769 = vmatpush1.bf16.msra.mxu0 %v760
        %770 = vmatprep.subr.bf16.mxu0 0
        %771 = vmatpush1.bf16.msra.mxu0 0
        %772 = vmatprep.subr.bf16.mxu0 0
        %773 = vmatpush1.bf16.msra.mxu0 0
        %774 = vmatprep.subr.bf16.mxu0 0
        %775 = vmatpush1.bf16.msra.mxu0 0
        %776 = vmatprep.subr.bf16.mxu0 0
        %777 = vmatpush1.bf16.msra.mxu0 0
        %778 = vmatprep.subr.bf16.mxu0 0
        %779 = vmatpush1.bf16.msra.mxu0 0
        %780 = vmatprep.subr.bf16.mxu0 0
        %781 = vmatpush1.bf16.msra.mxu0 0
        %782 = vmatprep.subr.bf16.mxu0 0
        %783 = vmatpush1.bf16.msra.mxu0 0
        %784 = vmatprep.subr.bf16.mxu0 0
        %785 = vmatpush1.bf16.msra.mxu0 0
        %786 = vmatprep.subr.bf16.mxu0 0
        %787 = vmatpush1.bf16.msra.mxu0 0
        %788 = vmatprep.subr.bf16.mxu0 0
        %789 = vmatpush1.bf16.msra.mxu0 0
        %790 = vmatprep.subr.bf16.mxu0 0
        %791 = vmatpush1.bf16.msra.mxu0 0
        %792 = vmatprep.subr.bf16.mxu0 0
        %793 = vmatpush1.bf16.msra.mxu0 0
        %794 = vmatprep.subr.bf16.mxu0 0
        %795 = vmatpush1.bf16.msra.mxu0 0
        %796 = vmatprep.subr.bf16.mxu0 0
        %797 = vmatpush1.bf16.msra.mxu0 0
        %798 = vmatprep.mubr.bf16.mxu0 0
        %799 = vmatmul.mubr.bf16.gmra.mrb[0].mxu0 %v764
        %v800 = vpop.f32.mrb[0].mxu0
        %v801 = vadd.f32 0.0, %v800
        %v802 = vpop.f32.mrb[0].mxu0
        %v803 = vpop.f32.mrb[0].mxu0
        %v804 = vpop.f32.mrb[0].mxu0
        %805 = vdwg.mxu0
        %v806 = vpack.c.bf16 %v801, %v801
        %808 = vrot.lane.b32.xlu0 %v806, 96
        %v809 = vpop.permute.xlu0 %808
        %vm810 = vcmask 64512
        %v812 = vsel %vm810, %v806, 0
        %v815 = vsel %vm810, %v809, 0
        %817 = vmatprep.subr.bf16.mxu0 0
        %818 = vmatpush1.bf16.xpose.msra.mxu0 %v815
        %819 = vmatprep.subr.bf16.mxu0 0
        %820 = vmatpush1.bf16.xpose.msra.mxu0 0
        %821 = vmatprep.subr.bf16.mxu0 0
        %822 = vmatpush1.bf16.xpose.msra.mxu0 0
        %823 = vmatprep.subr.bf16.mxu0 0
        %824 = vmatpush1.bf16.xpose.msra.mxu0 0
        %825 = vmatprep.subr.bf16.mxu0 0
        %826 = vmatpush1.bf16.xpose.msra.mxu0 0
        %827 = vmatprep.subr.bf16.mxu0 0
        %828 = vmatpush1.bf16.xpose.msra.mxu0 0
        %829 = vmatprep.subr.bf16.mxu0 0
        %830 = vmatpush1.bf16.xpose.msra.mxu0 0
        %831 = vmatprep.subr.bf16.mxu0 0
        %832 = vmatpush1.bf16.xpose.msra.mxu0 0
        %833 = vmatprep.subr.bf16.mxu0 0
        %834 = vmatpush1.bf16.xpose.msra.mxu0 0
        %835 = vmatprep.subr.bf16.mxu0 0
        %836 = vmatpush1.bf16.xpose.msra.mxu0 0
        %837 = vmatprep.subr.bf16.mxu0 0
        %838 = vmatpush1.bf16.xpose.msra.mxu0 0
        %839 = vmatprep.subr.bf16.mxu0 0
        %840 = vmatpush1.bf16.xpose.msra.mxu0 0
        %841 = vmatprep.subr.bf16.mxu0 0
        %842 = vmatpush1.bf16.xpose.msra.mxu0 0
        %843 = vmatprep.subr.bf16.mxu0 0
        %844 = vmatpush1.bf16.xpose.msra.mxu0 0
        %845 = vmatprep.subr.bf16.mxu0 0
        %846 = vmatpush1.bf16.xpose.msra.mxu0 0
        %847 = vmatprep.subr.bf16.mxu0 0
        %848 = vmatpush1.bf16.xpose.msra.mxu0 0
        %849 = vmatprep.mubr.bf16.mxu0 0
        %850 = vmatmul.mubr.bf16.gmra.mrb[0].mxu0 %v812
        %v851 = vpop.f32.mrb[0].mxu0
        %v852 = vadd.f32 0.0, %v851
        %v853 = vpop.f32.mrb[0].mxu0
        %v854 = vpop.f32.mrb[0].mxu0
        %v855 = vpop.f32.mrb[0].mxu0
        %856 = vdwg.mxu0
        %v857 = vsel %vm810, %v852, -inf
        %858 = vmax.xlane.f32.xlu0 %v857
        %v859 = vpop.xlane.xlu0 %858
        %v860 = vsub.f32 %v852, %v859
        %v861 = vmul.f32 %v860, 1.442695
        %v862 = vpow.pop %v861
        %v863 = vsel %vm810, %v862, 0.0
        %864 = vadd.xlane.f32.xlu0 %v863
        %v865 = vpop.xlane.xlu0 %864
        %v866 = vrcp.pop %v865
        %v867 = vmul.f32 %v862, %v866
        %v868 = vpack.c.bf16 %v867, %v867
        %869 = vrot.lane.b32.xlu0 %v806, 64
        %v870 = vpop.permute.xlu0 %869
        %v872 = vsel %vm810, %v868, 0
        %vm874 = vcmask 1043456
        %v876 = vsel %vm874, %v870, 0
        %878 = vmatprep.subr.bf16.mxu0 0
        %879 = vmatpush1.bf16.msra.mxu0 %v876
        %880 = vmatprep.subr.bf16.mxu0 0
        %881 = vmatpush1.bf16.msra.mxu0 0
        %882 = vmatprep.subr.bf16.mxu0 0
        %883 = vmatpush1.bf16.msra.mxu0 0
        %884 = vmatprep.subr.bf16.mxu0 0
        %885 = vmatpush1.bf16.msra.mxu0 0
        %886 = vmatprep.subr.bf16.mxu0 0
        %887 = vmatpush1.bf16.msra.mxu0 0
        %888 = vmatprep.subr.bf16.mxu0 0
        %889 = vmatpush1.bf16.msra.mxu0 0
        %890 = vmatprep.subr.bf16.mxu0 0
        %891 = vmatpush1.bf16.msra.mxu0 0
        %892 = vmatprep.subr.bf16.mxu0 0
        %893 = vmatpush1.bf16.msra.mxu0 0
        %894 = vmatprep.subr.bf16.mxu0 0
        %895 = vmatpush1.bf16.msra.mxu0 0
        %896 = vmatprep.subr.bf16.mxu0 0
        %897 = vmatpush1.bf16.msra.mxu0 0
        %898 = vmatprep.subr.bf16.mxu0 0
        %899 = vmatpush1.bf16.msra.mxu0 0
        %900 = vmatprep.subr.bf16.mxu0 0
        %901 = vmatpush1.bf16.msra.mxu0 0
        %902 = vmatprep.subr.bf16.mxu0 0
        %903 = vmatpush1.bf16.msra.mxu0 0
        %904 = vmatprep.subr.bf16.mxu0 0
        %905 = vmatpush1.bf16.msra.mxu0 0
        %906 = vmatprep.subr.bf16.mxu0 0
        %907 = vmatpush1.bf16.msra.mxu0 0
        %908 = vmatprep.subr.bf16.mxu0 0
        %909 = vmatpush1.bf16.msra.mxu0 0
        %910 = vmatprep.mubr.bf16.mxu0 0
        %911 = vmatmul.mubr.bf16.gmra.mrb[0].mxu0 %v872
        %v912 = vpop.f32.mrb[0].mxu0
        %v913 = vadd.f32 0.0, %v912
        %v914 = vpop.f32.mrb[0].mxu0
        %v915 = vpop.f32.mrb[0].mxu0
        %v916 = vpop.f32.mrb[0].mxu0
        %917 = vdwg.mxu0
        %v918 = vpack.c.bf16 %v913, %v913
        %v919 = vld [vmem:[%s692] sm:$0xf]
        %920 = vrot.lane.b32.xlu0 %v806, 120
        %v921 = vpop.permute.xlu0 %920
        %922 = vrot.lane.b32.xlu0 %v806, 88
        %v923 = vpop.permute.xlu0 %922
        %v925 = vsel %vm810, %v921, 0
        %v928 = vsel %vm810, %v923, 0
        %930 = vmatprep.subr.bf16.mxu0 0
        %931 = vmatpush1.bf16.xpose.msra.mxu0 %v928
        %932 = vmatprep.subr.bf16.mxu0 0
        %933 = vmatpush1.bf16.xpose.msra.mxu0 0
        %934 = vmatprep.subr.bf16.mxu0 0
        %935 = vmatpush1.bf16.xpose.msra.mxu0 0
        %936 = vmatprep.subr.bf16.mxu0 0
        %937 = vmatpush1.bf16.xpose.msra.mxu0 0
        %938 = vmatprep.subr.bf16.mxu0 0
        %939 = vmatpush1.bf16.xpose.msra.mxu0 0
        %940 = vmatprep.subr.bf16.mxu0 0
        %941 = vmatpush1.bf16.xpose.msra.mxu0 0
        %942 = vmatprep.subr.bf16.mxu0 0
        %943 = vmatpush1.bf16.xpose.msra.mxu0 0
        %944 = vmatprep.subr.bf16.mxu0 0
        %945 = vmatpush1.bf16.xpose.msra.mxu0 0
        %946 = vmatprep.subr.bf16.mxu0 0
        %947 = vmatpush1.bf16.xpose.msra.mxu0 0
        %948 = vmatprep.subr.bf16.mxu0 0
        %949 = vmatpush1.bf16.xpose.msra.mxu0 0
        %950 = vmatprep.subr.bf16.mxu0 0
        %951 = vmatpush1.bf16.xpose.msra.mxu0 0
        %952 = vmatprep.subr.bf16.mxu0 0
        %953 = vmatpush1.bf16.xpose.msra.mxu0 0
        %954 = vmatprep.subr.bf16.mxu0 0
        %955 = vmatpush1.bf16.xpose.msra.mxu0 0
        %956 = vmatprep.subr.bf16.mxu0 0
        %957 = vmatpush1.bf16.xpose.msra.mxu0 0
        %958 = vmatprep.subr.bf16.mxu0 0
        %959 = vmatpush1.bf16.xpose.msra.mxu0 0
        %960 = vmatprep.subr.bf16.mxu0 0
        %961 = vmatpush1.bf16.xpose.msra.mxu0 0
        %962 = vmatprep.mubr.bf16.mxu0 0
        %963 = vmatmul.mubr.bf16.gmra.mrb[0].mxu0 %v925
        %v964 = vpop.f32.mrb[0].mxu0
        %v965 = vadd.f32 0.0, %v964
        %v966 = vpop.f32.mrb[0].mxu0
        %v967 = vpop.f32.mrb[0].mxu0
        %v968 = vpop.f32.mrb[0].mxu0
        %969 = vdwg.mxu0
        %v970 = vsel %vm810, %v965, -inf
        %971 = vmax.xlane.f32.xlu0 %v970
        %v972 = vpop.xlane.xlu0 %971
        %v973 = vsub.f32 %v965, %v972
        %v974 = vmul.f32 %v973, 1.442695
        %v975 = vpow.pop %v974
        %v976 = vsel %vm810, %v975, 0.0
        %977 = vadd.xlane.f32.xlu0 %v976
        %v978 = vpop.xlane.xlu0 %977
        %v979 = vrcp.pop %v978
        %v980 = vmul.f32 %v975, %v979
        %v981 = vpack.c.bf16 %v980, %v980
        %982 = vrot.lane.b32.xlu0 %v806, 56
        %v983 = vpop.permute.xlu0 %982
        %v985 = vsel %vm810, %v981, 0
        %v988 = vsel %vm874, %v983, 0
        %990 = vmatprep.subr.bf16.mxu0 0
        %991 = vmatpush1.bf16.msra.mxu0 %v988
        %992 = vmatprep.subr.bf16.mxu0 0
        %993 = vmatpush1.bf16.msra.mxu0 0
        %994 = vmatprep.subr.bf16.mxu0 0
        %995 = vmatpush1.bf16.msra.mxu0 0
        %996 = vmatprep.subr.bf16.mxu0 0
        %997 = vmatpush1.bf16.msra.mxu0 0
        %998 = vmatprep.subr.bf16.mxu0 0
        %999 = vmatpush1.bf16.msra.mxu0 0
        %1000 = vmatprep.subr.bf16.mxu0 0
        %1001 = vmatpush1.bf16.msra.mxu0 0
        %1002 = vmatprep.subr.bf16.mxu0 0
        %1003 = vmatpush1.bf16.msra.mxu0 0
        %1004 = vmatprep.subr.bf16.mxu0 0
        %1005 = vmatpush1.bf16.msra.mxu0 0
        %1006 = vmatprep.subr.bf16.mxu0 0
        %1007 = vmatpush1.bf16.msra.mxu0 0
        %1008 = vmatprep.subr.bf16.mxu0 0
        %1009 = vmatpush1.bf16.msra.mxu0 0
        %1010 = vmatprep.subr.bf16.mxu0 0
        %1011 = vmatpush1.bf16.msra.mxu0 0
        %1012 = vmatprep.subr.bf16.mxu0 0
        %1013 = vmatpush1.bf16.msra.mxu0 0
        %1014 = vmatprep.subr.bf16.mxu0 0
        %1015 = vmatpush1.bf16.msra.mxu0 0
        %1016 = vmatprep.subr.bf16.mxu0 0
        %1017 = vmatpush1.bf16.msra.mxu0 0
        %1018 = vmatprep.subr.bf16.mxu0 0
        %1019 = vmatpush1.bf16.msra.mxu0 0
        %1020 = vmatprep.subr.bf16.mxu0 0
        %1021 = vmatpush1.bf16.msra.mxu0 0
        %1022 = vmatprep.mubr.bf16.mxu0 0
        %1023 = vmatmul.mubr.bf16.gmra.mrb[0].mxu0 %v985
        %v1024 = vpop.f32.mrb[0].mxu0
        %v1025 = vadd.f32 0.0, %v1024
        %v1026 = vpop.f32.mrb[0].mxu0
        %v1027 = vpop.f32.mrb[0].mxu0
        %v1028 = vpop.f32.mrb[0].mxu0
        %1029 = vdwg.mxu0
        %v1030 = vpack.c.bf16 %v1025, %v1025
        %s1031 = scalar_lea.vmem %s692, 4
        %v1032 = vld [vmem:[%s1031] sm:$0xf]
        %v1034 = vsel %vm810, %v1030, 0
        %v1037 = vsel %vm874, %v1032, 0
        %1039 = vmatprep.subr.bf16.mxu0 0
        %1040 = vmatpush1.bf16.msra.mxu0 %v1037
        %1041 = vmatprep.subr.bf16.mxu0 0
        %1042 = vmatpush1.bf16.msra.mxu0 0
        %1043 = vmatprep.subr.bf16.mxu0 0
        %1044 = vmatpush1.bf16.msra.mxu0 0
        %1045 = vmatprep.subr.bf16.mxu0 0
        %1046 = vmatpush1.bf16.msra.mxu0 0
        %1047 = vmatprep.subr.bf16.mxu0 0
        %1048 = vmatpush1.bf16.msra.mxu0 0
        %1049 = vmatprep.subr.bf16.mxu0 0
        %1050 = vmatpush1.bf16.msra.mxu0 0
        %1051 = vmatprep.subr.bf16.mxu0 0
        %1052 = vmatpush1.bf16.msra.mxu0 0
        %1053 = vmatprep.subr.bf16.mxu0 0
        %1054 = vmatpush1.bf16.msra.mxu0 0
        %1055 = vmatprep.subr.bf16.mxu0 0
        %1056 = vmatpush1.bf16.msra.mxu0 0
        %1057 = vmatprep.subr.bf16.mxu0 0
        %1058 = vmatpush1.bf16.msra.mxu0 0
        %1059 = vmatprep.subr.bf16.mxu0 0
        %1060 = vmatpush1.bf16.msra.mxu0 0
        %1061 = vmatprep.subr.bf16.mxu0 0
        %1062 = vmatpush1.bf16.msra.mxu0 0
        %1063 = vmatprep.subr.bf16.mxu0 0
        %1064 = vmatpush1.bf16.msra.mxu0 0
        %1065 = vmatprep.subr.bf16.mxu0 0
        %1066 = vmatpush1.bf16.msra.mxu0 0
        %1067 = vmatprep.subr.bf16.mxu0 0
        %1068 = vmatpush1.bf16.msra.mxu0 0
        %1069 = vmatprep.subr.bf16.mxu0 0
        %1070 = vmatpush1.bf16.msra.mxu0 0
        %1071 = vmatprep.mubr.bf16.mxu0 0
        %1072 = vmatmul.mubr.bf16.gmra.mrb[0].mxu0 %v1034
        %v1073 = vpop.f32.mrb[0].mxu0
        %v1074 = vadd.f32 0.0, %v1073
        %v1075 = vpop.f32.mrb[0].mxu0
        %v1076 = vpop.f32.mrb[0].mxu0
        %v1077 = vpop.f32.mrb[0].mxu0
        %1078 = vdwg.mxu0
        %v1080 = vsel %vm810, %v918, 0
        %v1083 = vsel %vm874, %v919, 0
        %1085 = vmatprep.subr.bf16.mxu0 0
        %1086 = vmatpush1.bf16.msra.mxu0 %v1083
        %1087 = vmatprep.subr.bf16.mxu0 0
        %1088 = vmatpush1.bf16.msra.mxu0 0
        %1089 = vmatprep.subr.bf16.mxu0 0
        %1090 = vmatpush1.bf16.msra.mxu0 0
        %1091 = vmatprep.subr.bf16.mxu0 0
        %1092 = vmatpush1.bf16.msra.mxu0 0
        %1093 = vmatprep.subr.bf16.mxu0 0
        %1094 = vmatpush1.bf16.msra.mxu0 0
        %1095 = vmatprep.subr.bf16.mxu0 0
        %1096 = vmatpush1.bf16.msra.mxu0 0
        %1097 = vmatprep.subr.bf16.mxu0 0
        %1098 = vmatpush1.bf16.msra.mxu0 0
        %1099 = vmatprep.subr.bf16.mxu0 0
        %1100 = vmatpush1.bf16.msra.mxu0 0
        %1101 = vmatprep.subr.bf16.mxu0 0
        %1102 = vmatpush1.bf16.msra.mxu0 0
        %1103 = vmatprep.subr.bf16.mxu0 0
        %1104 = vmatpush1.bf16.msra.mxu0 0
        %1105 = vmatprep.subr.bf16.mxu0 0
        %1106 = vmatpush1.bf16.msra.mxu0 0
        %1107 = vmatprep.subr.bf16.mxu0 0
        %1108 = vmatpush1.bf16.msra.mxu0 0
        %1109 = vmatprep.subr.bf16.mxu0 0
        %1110 = vmatpush1.bf16.msra.mxu0 0
        %1111 = vmatprep.subr.bf16.mxu0 0
        %1112 = vmatpush1.bf16.msra.mxu0 0
        %1113 = vmatprep.subr.bf16.mxu0 0
        %1114 = vmatpush1.bf16.msra.mxu0 0
        %1115 = vmatprep.subr.bf16.mxu0 0
        %1116 = vmatpush1.bf16.msra.mxu0 0
        %1117 = vmatprep.mubr.bf16.mxu0 0
        %1118 = vmatmul.mubr.bf16.gmra.mrb[0].mxu0 %v1080
        %v1119 = vpop.f32.mrb[0].mxu0
        %v1120 = vadd.f32 %v1074, %v1119
        %v1121 = vpop.f32.mrb[0].mxu0
        %v1122 = vpop.f32.mrb[0].mxu0
        %v1123 = vpop.f32.mrb[0].mxu0
        %1124 = vdwg.mxu0
        %1125 = vrot.lane.b32.xlu0 %v806, 112
        %v1126 = vpop.permute.xlu0 %1125
        %1127 = vrot.lane.b32.xlu0 %v806, 80
        %v1128 = vpop.permute.xlu0 %1127
        %v1130 = vsel %vm810, %v1126, 0
        %v1133 = vsel %vm810, %v1128, 0
        %1135 = vmatprep.subr.bf16.mxu0 0
        %1136 = vmatpush1.bf16.xpose.msra.mxu0 %v1133
        %1137 = vmatprep.subr.bf16.mxu0 0
        %1138 = vmatpush1.bf16.xpose.msra.mxu0 0
        %1139 = vmatprep.subr.bf16.mxu0 0
        %1140 = vmatpush1.bf16.xpose.msra.mxu0 0
        %1141 = vmatprep.subr.bf16.mxu0 0
        %1142 = vmatpush1.bf16.xpose.msra.mxu0 0
        %1143 = vmatprep.subr.bf16.mxu0 0
        %1144 = vmatpush1.bf16.xpose.msra.mxu0 0
        %1145 = vmatprep.subr.bf16.mxu0 0
        %1146 = vmatpush1.bf16.xpose.msra.mxu0 0
        %1147 = vmatprep.subr.bf16.mxu0 0
        %1148 = vmatpush1.bf16.xpose.msra.mxu0 0
        %1149 = vmatprep.subr.bf16.mxu0 0
        %1150 = vmatpush1.bf16.xpose.msra.mxu0 0
        %1151 = vmatprep.subr.bf16.mxu0 0
        %1152 = vmatpush1.bf16.xpose.msra.mxu0 0
        %1153 = vmatprep.subr.bf16.mxu0 0
        %1154 = vmatpush1.bf16.xpose.msra.mxu0 0
        %1155 = vmatprep.subr.bf16.mxu0 0
        %1156 = vmatpush1.bf16.xpose.msra.mxu0 0
        %1157 = vmatprep.subr.bf16.mxu0 0
        %1158 = vmatpush1.bf16.xpose.msra.mxu0 0
        %1159 = vmatprep.subr.bf16.mxu0 0
        %1160 = vmatpush1.bf16.xpose.msra.mxu0 0
        %1161 = vmatprep.subr.bf16.mxu0 0
        %1162 = vmatpush1.bf16.xpose.msra.mxu0 0
        %1163 = vmatprep.subr.bf16.mxu0 0
        %1164 = vmatpush1.bf16.xpose.msra.mxu0 0
        %1165 = vmatprep.subr.bf16.mxu0 0
        %1166 = vmatpush1.bf16.xpose.msra.mxu0 0
        %1167 = vmatprep.mubr.bf16.mxu0 0
        %1168 = vmatmul.mubr.bf16.gmra.mrb[0].mxu0 %v1130
        %v1169 = vpop.f32.mrb[0].mxu0
        %v1170 = vadd.f32 0.0, %v1169
        %v1171 = vpop.f32.mrb[0].mxu0
        %v1172 = vpop.f32.mrb[0].mxu0
        %v1173 = vpop.f32.mrb[0].mxu0
        %1174 = vdwg.mxu0
        %v1175 = vsel %vm810, %v1170, -inf
        %1176 = vmax.xlane.f32.xlu0 %v1175
        %v1177 = vpop.xlane.xlu0 %1176
        %v1178 = vsub.f32 %v1170, %v1177
        %v1179 = vmul.f32 %v1178, 1.442695
        %v1180 = vpow.pop %v1179
        %v1181 = vsel %vm810, %v1180, 0.0
        %1182 = vadd.xlane.f32.xlu0 %v1181
        %v1183 = vpop.xlane.xlu0 %1182
        %v1184 = vrcp.pop %v1183
        %v1185 = vmul.f32 %v1180, %v1184
        %v1186 = vpack.c.bf16 %v1185, %v1185
        %1187 = vrot.lane.b32.xlu0 %v806, 48
        %v1188 = vpop.permute.xlu0 %1187
        %v1190 = vsel %vm810, %v1186, 0
        %v1193 = vsel %vm874, %v1188, 0
        %1195 = vmatprep.subr.bf16.mxu0 0
        %1196 = vmatpush1.bf16.msra.mxu0 %v1193
        %1197 = vmatprep.subr.bf16.mxu0 0
        %1198 = vmatpush1.bf16.msra.mxu0 0
        %1199 = vmatprep.subr.bf16.mxu0 0
        %1200 = vmatpush1.bf16.msra.mxu0 0
        %1201 = vmatprep.subr.bf16.mxu0 0
        %1202 = vmatpush1.bf16.msra.mxu0 0
        %1203 = vmatprep.subr.bf16.mxu0 0
        %1204 = vmatpush1.bf16.msra.mxu0 0
        %1205 = vmatprep.subr.bf16.mxu0 0
        %1206 = vmatpush1.bf16.msra.mxu0 0
        %1207 = vmatprep.subr.bf16.mxu0 0
        %1208 = vmatpush1.bf16.msra.mxu0 0
        %1209 = vmatprep.subr.bf16.mxu0 0
        %1210 = vmatpush1.bf16.msra.mxu0 0
        %1211 = vmatprep.subr.bf16.mxu0 0
        %1212 = vmatpush1.bf16.msra.mxu0 0
        %1213 = vmatprep.subr.bf16.mxu0 0
        %1214 = vmatpush1.bf16.msra.mxu0 0
        %1215 = vmatprep.subr.bf16.mxu0 0
        %1216 = vmatpush1.bf16.msra.mxu0 0
        %1217 = vmatprep.subr.bf16.mxu0 0
        %1218 = vmatpush1.bf16.msra.mxu0 0
        %1219 = vmatprep.subr.bf16.mxu0 0
        %1220 = vmatpush1.bf16.msra.mxu0 0
        %1221 = vmatprep.subr.bf16.mxu0 0
        %1222 = vmatpush1.bf16.msra.mxu0 0
        %1223 = vmatprep.subr.bf16.mxu0 0
        %1224 = vmatpush1.bf16.msra.mxu0 0
        %1225 = vmatprep.subr.bf16.mxu0 0
        %1226 = vmatpush1.bf16.msra.mxu0 0
        %1227 = vmatprep.mubr.bf16.mxu0 0
        %1228 = vmatmul.mubr.bf16.gmra.mrb[0].mxu0 %v1190
        %v1229 = vpop.f32.mrb[0].mxu0
        %v1230 = vadd.f32 0.0, %v1229
        %v1231 = vpop.f32.mrb[0].mxu0
        %v1232 = vpop.f32.mrb[0].mxu0
        %v1233 = vpop.f32.mrb[0].mxu0
        %1234 = vdwg.mxu0
        %v1235 = vpack.c.bf16 %v1230, %v1230
        %s1236 = scalar_lea.vmem %s692, 8
        %v1237 = vld [vmem:[%s1236] sm:$0xf]
        %v1239 = vsel %vm810, %v1235, 0
        %v1242 = vsel %vm874, %v1237, 0
        %1244 = vmatprep.subr.bf16.mxu0 0
        %1245 = vmatpush1.bf16.msra.mxu0 %v1242
        %1246 = vmatprep.subr.bf16.mxu0 0
        %1247 = vmatpush1.bf16.msra.mxu0 0
        %1248 = vmatprep.subr.bf16.mxu0 0
        %1249 = vmatpush1.bf16.msra.mxu0 0
        %1250 = vmatprep.subr.bf16.mxu0 0
        %1251 = vmatpush1.bf16.msra.mxu0 0
        %1252 = vmatprep.subr.bf16.mxu0 0
        %1253 = vmatpush1.bf16.msra.mxu0 0
        %1254 = vmatprep.subr.bf16.mxu0 0
        %1255 = vmatpush1.bf16.msra.mxu0 0
        %1256 = vmatprep.subr.bf16.mxu0 0
        %1257 = vmatpush1.bf16.msra.mxu0 0
        %1258 = vmatprep.subr.bf16.mxu0 0
        %1259 = vmatpush1.bf16.msra.mxu0 0
        %1260 = vmatprep.subr.bf16.mxu0 0
        %1261 = vmatpush1.bf16.msra.mxu0 0
        %1262 = vmatprep.subr.bf16.mxu0 0
        %1263 = vmatpush1.bf16.msra.mxu0 0
        %1264 = vmatprep.subr.bf16.mxu0 0
        %1265 = vmatpush1.bf16.msra.mxu0 0
        %1266 = vmatprep.subr.bf16.mxu0 0
        %1267 = vmatpush1.bf16.msra.mxu0 0
        %1268 = vmatprep.subr.bf16.mxu0 0
        %1269 = vmatpush1.bf16.msra.mxu0 0
        %1270 = vmatprep.subr.bf16.mxu0 0
        %1271 = vmatpush1.bf16.msra.mxu0 0
        %1272 = vmatprep.subr.bf16.mxu0 0
        %1273 = vmatpush1.bf16.msra.mxu0 0
        %1274 = vmatprep.subr.bf16.mxu0 0
        %1275 = vmatpush1.bf16.msra.mxu0 0
        %1276 = vmatprep.mubr.bf16.mxu0 0
        %1277 = vmatmul.mubr.bf16.gmra.mrb[0].mxu0 %v1239
        %v1278 = vpop.f32.mrb[0].mxu0
        %v1279 = vadd.f32 0.0, %v1278
        %v1280 = vpop.f32.mrb[0].mxu0
        %v1281 = vpop.f32.mrb[0].mxu0
        %v1282 = vpop.f32.mrb[0].mxu0
        %1283 = vdwg.mxu0
        %v1284 = vadd.f32 %v1120, %v1279
        %1285 = vrot.lane.b32.xlu0 %v806, 104
        %v1286 = vpop.permute.xlu0 %1285
        %1287 = vrot.lane.b32.xlu0 %v806, 72
        %v1288 = vpop.permute.xlu0 %1287
        %v1290 = vsel %vm810, %v1286, 0
        %v1293 = vsel %vm810, %v1288, 0
        %1295 = vmatprep.subr.bf16.mxu0 0
        %1296 = vmatpush1.bf16.xpose.msra.mxu0 %v1293
        %1297 = vmatprep.subr.bf16.mxu0 0
        %1298 = vmatpush1.bf16.xpose.msra.mxu0 0
        %1299 = vmatprep.subr.bf16.mxu0 0
        %1300 = vmatpush1.bf16.xpose.msra.mxu0 0
        %1301 = vmatprep.subr.bf16.mxu0 0
        %1302 = vmatpush1.bf16.xpose.msra.mxu0 0
        %1303 = vmatprep.subr.bf16.mxu0 0
        %1304 = vmatpush1.bf16.xpose.msra.mxu0 0
        %1305 = vmatprep.subr.bf16.mxu0 0
        %1306 = vmatpush1.bf16.xpose.msra.mxu0 0
        %1307 = vmatprep.subr.bf16.mxu0 0
        %1308 = vmatpush1.bf16.xpose.msra.mxu0 0
        %1309 = vmatprep.subr.bf16.mxu0 0
        %1310 = vmatpush1.bf16.xpose.msra.mxu0 0
        %1311 = vmatprep.subr.bf16.mxu0 0
        %1312 = vmatpush1.bf16.xpose.msra.mxu0 0
        %1313 = vmatprep.subr.bf16.mxu0 0
        %1314 = vmatpush1.bf16.xpose.msra.mxu0 0
        %1315 = vmatprep.subr.bf16.mxu0 0
        %1316 = vmatpush1.bf16.xpose.msra.mxu0 0
        %1317 = vmatprep.subr.bf16.mxu0 0
        %1318 = vmatpush1.bf16.xpose.msra.mxu0 0
        %1319 = vmatprep.subr.bf16.mxu0 0
        %1320 = vmatpush1.bf16.xpose.msra.mxu0 0
        %1321 = vmatprep.subr.bf16.mxu0 0
        %1322 = vmatpush1.bf16.xpose.msra.mxu0 0
        %1323 = vmatprep.subr.bf16.mxu0 0
        %1324 = vmatpush1.bf16.xpose.msra.mxu0 0
        %1325 = vmatprep.subr.bf16.mxu0 0
        %1326 = vmatpush1.bf16.xpose.msra.mxu0 0
        %1327 = vmatprep.mubr.bf16.mxu0 0
        %1328 = vmatmul.mubr.bf16.gmra.mrb[0].mxu0 %v1290
        %v1329 = vpop.f32.mrb[0].mxu0
        %v1330 = vadd.f32 0.0, %v1329
        %v1331 = vpop.f32.mrb[0].mxu0
        %v1332 = vpop.f32.mrb[0].mxu0
        %v1333 = vpop.f32.mrb[0].mxu0
        %1334 = vdwg.mxu0
        %v1335 = vsel %vm810, %v1330, -inf
        %1336 = vmax.xlane.f32.xlu0 %v1335
        %v1337 = vpop.xlane.xlu0 %1336
        %v1338 = vsub.f32 %v1330, %v1337
        %v1339 = vmul.f32 %v1338, 1.442695
        %v1340 = vpow.pop %v1339
        %v1341 = vsel %vm810, %v1340, 0.0
        %1342 = vadd.xlane.f32.xlu0 %v1341
        %v1343 = vpop.xlane.xlu0 %1342
        %v1344 = vrcp.pop %v1343
        %v1345 = vmul.f32 %v1340, %v1344
        %v1346 = vpack.c.bf16 %v1345, %v1345
        %1347 = vrot.lane.b32.xlu0 %v806, 40
        %v1348 = vpop.permute.xlu0 %1347
        %v1350 = vsel %vm810, %v1346, 0
        %v1353 = vsel %vm874, %v1348, 0
        %1355 = vmatprep.subr.bf16.mxu0 0
        %1356 = vmatpush1.bf16.msra.mxu0 %v1353
        %1357 = vmatprep.subr.bf16.mxu0 0
        %1358 = vmatpush1.bf16.msra.mxu0 0
        %1359 = vmatprep.subr.bf16.mxu0 0
        %1360 = vmatpush1.bf16.msra.mxu0 0
        %1361 = vmatprep.subr.bf16.mxu0 0
        %1362 = vmatpush1.bf16.msra.mxu0 0
        %1363 = vmatprep.subr.bf16.mxu0 0
        %1364 = vmatpush1.bf16.msra.mxu0 0
        %1365 = vmatprep.subr.bf16.mxu0 0
        %1366 = vmatpush1.bf16.msra.mxu0 0
        %1367 = vmatprep.subr.bf16.mxu0 0
        %1368 = vmatpush1.bf16.msra.mxu0 0
        %1369 = vmatprep.subr.bf16.mxu0 0
        %1370 = vmatpush1.bf16.msra.mxu0 0
        %1371 = vmatprep.subr.bf16.mxu0 0
        %1372 = vmatpush1.bf16.msra.mxu0 0
        %1373 = vmatprep.subr.bf16.mxu0 0
        %1374 = vmatpush1.bf16.msra.mxu0 0
        %1375 = vmatprep.subr.bf16.mxu0 0
        %1376 = vmatpush1.bf16.msra.mxu0 0
        %1377 = vmatprep.subr.bf16.mxu0 0
        %1378 = vmatpush1.bf16.msra.mxu0 0
        %1379 = vmatprep.subr.bf16.mxu0 0
        %1380 = vmatpush1.bf16.msra.mxu0 0
        %1381 = vmatprep.subr.bf16.mxu0 0
        %1382 = vmatpush1.bf16.msra.mxu0 0
        %1383 = vmatprep.subr.bf16.mxu0 0
        %1384 = vmatpush1.bf16.msra.mxu0 0
        %1385 = vmatprep.subr.bf16.mxu0 0
        %1386 = vmatpush1.bf16.msra.mxu0 0
        %1387 = vmatprep.mubr.bf16.mxu0 0
        %1388 = vmatmul.mubr.bf16.gmra.mrb[0].mxu0 %v1350
        %v1389 = vpop.f32.mrb[0].mxu0
        %v1390 = vadd.f32 0.0, %v1389
        %v1391 = vpop.f32.mrb[0].mxu0
        %v1392 = vpop.f32.mrb[0].mxu0
        %v1393 = vpop.f32.mrb[0].mxu0
        %1394 = vdwg.mxu0
        %v1395 = vpack.c.bf16 %v1390, %v1390
        %s1396 = scalar_lea.vmem %s692, 12
        %v1397 = vld [vmem:[%s1396] sm:$0xf]
        %v1399 = vsel %vm810, %v1395, 0
        %v1402 = vsel %vm874, %v1397, 0
        %1404 = vmatprep.subr.bf16.mxu0 0
        %1405 = vmatpush1.bf16.msra.mxu0 %v1402
        %1406 = vmatprep.subr.bf16.mxu0 0
        %1407 = vmatpush1.bf16.msra.mxu0 0
        %1408 = vmatprep.subr.bf16.mxu0 0
        %1409 = vmatpush1.bf16.msra.mxu0 0
        %1410 = vmatprep.subr.bf16.mxu0 0
        %1411 = vmatpush1.bf16.msra.mxu0 0
        %1412 = vmatprep.subr.bf16.mxu0 0
        %1413 = vmatpush1.bf16.msra.mxu0 0
        %1414 = vmatprep.subr.bf16.mxu0 0
        %1415 = vmatpush1.bf16.msra.mxu0 0
        %1416 = vmatprep.subr.bf16.mxu0 0
        %1417 = vmatpush1.bf16.msra.mxu0 0
        %1418 = vmatprep.subr.bf16.mxu0 0
        %1419 = vmatpush1.bf16.msra.mxu0 0
        %1420 = vmatprep.subr.bf16.mxu0 0
        %1421 = vmatpush1.bf16.msra.mxu0 0
        %1422 = vmatprep.subr.bf16.mxu0 0
        %1423 = vmatpush1.bf16.msra.mxu0 0
        %1424 = vmatprep.subr.bf16.mxu0 0
        %1425 = vmatpush1.bf16.msra.mxu0 0
        %1426 = vmatprep.subr.bf16.mxu0 0
        %1427 = vmatpush1.bf16.msra.mxu0 0
        %1428 = vmatprep.subr.bf16.mxu0 0
        %1429 = vmatpush1.bf16.msra.mxu0 0
        %1430 = vmatprep.subr.bf16.mxu0 0
        %1431 = vmatpush1.bf16.msra.mxu0 0
        %1432 = vmatprep.subr.bf16.mxu0 0
        %1433 = vmatpush1.bf16.msra.mxu0 0
        %1434 = vmatprep.subr.bf16.mxu0 0
        %1435 = vmatpush1.bf16.msra.mxu0 0
        %1436 = vmatprep.mubr.bf16.mxu0 0
        %1437 = vmatmul.mubr.bf16.gmra.mrb[0].mxu0 %v1399
        %v1438 = vpop.f32.mrb[0].mxu0
        %v1439 = vadd.f32 0.0, %v1438
        %v1440 = vpop.f32.mrb[0].mxu0
        %v1441 = vpop.f32.mrb[0].mxu0
        %v1442 = vpop.f32.mrb[0].mxu0
        %1443 = vdwg.mxu0
        %v1444 = vadd.f32 %v1284, %v1439
        %v1445 = vadd.f32 %v714, %v1444
        %v1446 = vld [vmem:[%s579] sm:$0x1]
        %v1447 = vld [vmem:[%s587] sm:$0x1]
        %v1448 = vsel %vm717, %v1445, 0.0
        %1449 = vadd.xlane.f32.xlu0 %v1448
        %v1450 = vpop.xlane.xlu0 %1449
        %v1451 = vmul.f32 %v1450, %v721
        %v1452 = vsub.f32 %v1445, %v1451
        %v1453 = vmul.f32 %v1452, %v1452
        %v1454 = vsel %vm717, %v1453, 0.0
        %1455 = vadd.xlane.f32.xlu0 %v1454
        %v1456 = vpop.xlane.xlu0 %1455
        %v1457 = vmul.f32 %v1456, %v721
        %v1458 = vadd.f32 %v1457, 1e-05
        %v1459 = vrsqrt.pop %v1458
        %v1460 = vmul.f32 %v1452, %v1459
        %v1462 = vlaneseq
        %v1463 = vshrl.u32 %v1462, 7
        %v1464 = vsub.s32 0, %v1463
        %v1465 = vrot.slane %v1446, %v1464
        %v1467 = vmul.f32 %v1460, %v1465
        %v1469 = vlaneseq
        %v1470 = vshrl.u32 %v1469, 7
        %v1471 = vsub.s32 0, %v1470
        %v1472 = vrot.slane %v1447, %v1471
        %v1474 = vadd.f32 %v1467, %v1472
        %v1475 = vpack.c.bf16 %v1474, %v1474
        %v1476 = vld [vmem:[%s697] sm:$0xf]
        %v1477 = vld [vmem:[%s697 + $0x4] sm:$0xf]
        %v1478 = vld [vmem:[%s697 + $0x8] sm:$0xf]
        %v1479 = vld [vmem:[%s697 + $0xc] sm:$0xf]
        %v1480 = vld [vmem:[%s595] sm:$0x1]
        %v1482 = vlaneseq
        %v1483 = vshrl.u32 %v1482, 7
        %v1484 = vsub.s32 0, %v1483
        %v1485 = vrot.slane %v1480, %v1484
        %v1491 = vunpack.c.l.b16 %v1476
        %v1492 = vunpack.c.l.b16 %v1477
        %v1493 = vunpack.c.l.b16 %v1478
        %v1494 = vunpack.c.l.b16 %v1479
        %v1495 = vpack.c.b16 %v1492, %v1491
        %v1496 = vpack.c.b16 %v1494, %v1493
        %v1500 = vsel %vm717, %v1475, 0
        %1502 = vmatprep.subr.bf16.mxu0 0
        %1503 = vmatpush1.bf16.msra.mxu0 %v1495
        %1504 = vmatprep.subr.bf16.mxu0 0
        %1505 = vmatpush1.bf16.msra.mxu0 %v1496
        %1506 = vmatprep.subr.bf16.mxu0 0
        %1507 = vmatpush1.bf16.msra.mxu0 0
        %1508 = vmatprep.subr.bf16.mxu0 0
        %1509 = vmatpush1.bf16.msra.mxu0 0
        %1510 = vmatprep.subr.bf16.mxu0 0
        %1511 = vmatpush1.bf16.msra.mxu0 0
        %1512 = vmatprep.subr.bf16.mxu0 0
        %1513 = vmatpush1.bf16.msra.mxu0 0
        %1514 = vmatprep.subr.bf16.mxu0 0
        %1515 = vmatpush1.bf16.msra.mxu0 0
        %1516 = vmatprep.subr.bf16.mxu0 0
        %1517 = vmatpush1.bf16.msra.mxu0 0
        %1518 = vmatprep.subr.bf16.mxu0 0
        %1519 = vmatpush1.bf16.msra.mxu0 0
        %1520 = vmatprep.subr.bf16.mxu0 0
        %1521 = vmatpush1.bf16.msra.mxu0 0
        %1522 = vmatprep.subr.bf16.mxu0 0
        %1523 = vmatpush1.bf16.msra.mxu0 0
        %1524 = vmatprep.subr.bf16.mxu0 0
        %1525 = vmatpush1.bf16.msra.mxu0 0
        %1526 = vmatprep.subr.bf16.mxu0 0
        %1527 = vmatpush1.bf16.msra.mxu0 0
        %1528 = vmatprep.subr.bf16.mxu0 0
        %1529 = vmatpush1.bf16.msra.mxu0 0
        %1530 = vmatprep.subr.bf16.mxu0 0
        %1531 = vmatpush1.bf16.msra.mxu0 0
        %1532 = vmatprep.subr.bf16.mxu0 0
        %1533 = vmatpush1.bf16.msra.mxu0 0
        %1534 = vmatprep.mubr.bf16.mxu0 0
        %1535 = vmatmul.mubr.bf16.gmra.mrb[0].mxu0 %v1500
        %v1536 = vpop.f32.mrb[0].mxu0
        %v1537 = vadd.f32 %v1485, %v1536
        %v1538 = vpop.f32.mrb[0].mxu0
        %v1539 = vpop.f32.mrb[0].mxu0
        %v1540 = vpop.f32.mrb[0].mxu0
        %1541 = vdwg.mxu0
        %v1542 = vmax.f32 %v1537, 0.0
        %v1543 = vpack.c.bf16 %v1542, %v1542
        %v1544 = vld [vmem:[%s702] sm:$0xf]
        %v1545 = vld [vmem:[%s702 + $0x4] sm:$0xf]
        %v1546 = vld [vmem:[%s702 + $0x8] sm:$0xf]
        %v1547 = vld [vmem:[%s702 + $0xc] sm:$0xf]
        %v1548 = vld [vmem:[%s702 + $0x10] sm:$0xf]
        %v1549 = vld [vmem:[%s702 + $0x14] sm:$0xf]
        %v1550 = vld [vmem:[%s702 + $0x18] sm:$0xf]
        %v1551 = vld [vmem:[%s702 + $0x1c] sm:$0xf]
        %v1552 = vld [vmem:[%s705] sm:$0x1]
        %v1554 = vlaneseq
        %v1555 = vshrl.u32 %v1554, 7
        %v1556 = vsub.s32 0, %v1555
        %v1557 = vrot.slane %v1552, %v1556
        %v1567 = vunpack.c.l.b16 %v1544
        %v1568 = vunpack.c.l.b16 %v1545
        %v1569 = vunpack.c.l.b16 %v1546
        %v1570 = vunpack.c.l.b16 %v1547
        %v1571 = vunpack.c.l.b16 %v1548
        %v1572 = vunpack.c.l.b16 %v1549
        %v1573 = vunpack.c.l.b16 %v1550
        %v1574 = vunpack.c.l.b16 %v1551
        %v1575 = vpack.c.b16 %v1568, %v1567
        %v1576 = vpack.c.b16 %v1570, %v1569
        %v1577 = vpack.c.b16 %v1572, %v1571
        %v1578 = vpack.c.b16 %v1574, %v1573
        %vm1583 = vcmask 523264
        %v1585 = vsel %vm1583, %v1543, 0
        %1587 = vmatprep.subr.bf16.mxu0 0
        %1588 = vmatpush1.bf16.msra.mxu0 %v1575
        %1589 = vmatprep.subr.bf16.mxu0 0
        %1590 = vmatpush1.bf16.msra.mxu0 %v1576
        %1591 = vmatprep.subr.bf16.mxu0 0
        %1592 = vmatpush1.bf16.msra.mxu0 %v1577
        %1593 = vmatprep.subr.bf16.mxu0 0
        %1594 = vmatpush1.bf16.msra.mxu0 %v1578
        %1595 = vmatprep.subr.bf16.mxu0 0
        %1596 = vmatpush1.bf16.msra.mxu0 0
        %1597 = vmatprep.subr.bf16.mxu0 0
        %1598 = vmatpush1.bf16.msra.mxu0 0
        %1599 = vmatprep.subr.bf16.mxu0 0
        %1600 = vmatpush1.bf16.msra.mxu0 0
        %1601 = vmatprep.subr.bf16.mxu0 0
        %1602 = vmatpush1.bf16.msra.mxu0 0
        %1603 = vmatprep.subr.bf16.mxu0 0
        %1604 = vmatpush1.bf16.msra.mxu0 0
        %1605 = vmatprep.subr.bf16.mxu0 0
        %1606 = vmatpush1.bf16.msra.mxu0 0
        %1607 = vmatprep.subr.bf16.mxu0 0
        %1608 = vmatpush1.bf16.msra.mxu0 0
        %1609 = vmatprep.subr.bf16.mxu0 0
        %1610 = vmatpush1.bf16.msra.mxu0 0
        %1611 = vmatprep.subr.bf16.mxu0 0
        %1612 = vmatpush1.bf16.msra.mxu0 0
        %1613 = vmatprep.subr.bf16.mxu0 0
        %1614 = vmatpush1.bf16.msra.mxu0 0
        %1615 = vmatprep.subr.bf16.mxu0 0
        %1616 = vmatpush1.bf16.msra.mxu0 0
        %1617 = vmatprep.subr.bf16.mxu0 0
        %1618 = vmatpush1.bf16.msra.mxu0 0
        %1619 = vmatprep.mubr.bf16.mxu0 0
        %1620 = vmatmul.mubr.bf16.gmra.mrb[0].mxu0 %v1585
        %v1621 = vpop.f32.mrb[0].mxu0
        %v1622 = vadd.f32 %v1557, %v1621
        %v1623 = vpop.f32.mrb[0].mxu0
        %v1624 = vpop.f32.mrb[0].mxu0
        %v1625 = vpop.f32.mrb[0].mxu0
        %1626 = vdwg.mxu0
        %v1627 = vadd.f32 %v1445, %v1622
        %1628 = vst.msk [vmem:[#allocation2] sm:$0xff] %vm717, %v1627
        %p1629 = scmp.eq.s32.totalorder %s41, 1
        // Predicated region
        $region97: #{tpu_custom_call.1} parent=71 // pred_check
          %p1630 = pneg %p1629
        $region98: #{tpu_custom_call.1} parent=71 // pred_check_branch
          %1632 = sbr.rel (%p1630) target = $region100
        $region99: #{tpu_custom_call.1} parent=71 // pred_region
          %v1633 = vld [vmem:[%s11] sm:$0x1]
          %v1634 = vld [vmem:[%s12] sm:$0x1]
          %v1635 = vsel %vm717, %v1627, 0.0
          %1636 = vadd.xlane.f32.xlu0 %v1635
          %v1637 = vpop.xlane.xlu0 %1636
          %v1638 = vmul.f32 %v1637, %v721
          %v1639 = vsub.f32 %v1627, %v1638
          %v1640 = vmul.f32 %v1639, %v1639
          %v1641 = vsel %vm717, %v1640, 0.0
          %1642 = vadd.xlane.f32.xlu0 %v1641
          %v1643 = vpop.xlane.xlu0 %1642
          %v1644 = vmul.f32 %v1643, %v721
          %v1645 = vadd.f32 %v1644, 1e-05
          %v1646 = vrsqrt.pop %v1645
          %v1647 = vmul.f32 %v1639, %v1646
          %v1649 = vlaneseq
          %v1650 = vshrl.u32 %v1649, 7
          %v1651 = vsub.s32 0, %v1650
          %v1652 = vrot.slane %v1633, %v1651
          %v1654 = vmul.f32 %v1647, %v1652
          %v1656 = vlaneseq
          %v1657 = vshrl.u32 %v1656, 7
          %v1658 = vsub.s32 0, %v1657
          %v1659 = vrot.slane %v1634, %v1658
          %v1661 = vadd.f32 %v1654, %v1659
          %1662 = vst.msk [vmem:[%s679] sm:$0xff] %vm717, %v1661
        $region100: #{tpu_custom_call.1} parent=71 // pred_fallthru
          _
        %s1663 = sand.u32 %s384, 1
        %s1664 = scalar_lea.sflag [#allocation5], %s1663
        %s1665 = sand.u32 %s384, 1
        %s1666 = smul.addr %s1665, 8
        %s1667 = scalar_lea.vmem [#allocation12], %s1666
        // Predicated region
        $region101: #{tpu_custom_call.1} parent=71 // pred_check
          %p1668 = pneg %p394
        $region102: #{tpu_custom_call.1} parent=71 // pred_check_branch
          %1670 = sbr.rel (%p1668) target = $region104
        $region103: #{tpu_custom_call.1} parent=71 // pred_region
          %s1672 = ssub.s32 128, 128
          %1673 = vsyncadd %s1664, %s1672
          %s1674 = smul.addr %s40, 128
          %s1675 = scalar_lea.hbm %s13, %s1674
          %s1677 = sshll.u32 %s1667, 4
          %s1678 = int_to_ptr.vmem [resolvable:$true] %s1677
          %1680 = dma.vmem_to_hbm [thread:$0]  %s1678, 128, %s1675, %s1664
        $region104: #{tpu_custom_call.1} parent=71 // pred_fallthru
          _
      $region72: #{tpu_custom_call.1} parent=5 // pred_fallthru
        _
      %p1681 = scmp.le.s32.totalorder 2, %s31
      // Predicated region
      $region105: #{tpu_custom_call.1} parent=5 // pred_check
        %p1682 = pneg %p1681
      $region106: #{tpu_custom_call.1} parent=5 // pred_check_branch
        %1684 = sbr.rel (%p1682) target = $region108
      $region107: #{tpu_custom_call.1} parent=5 // pred_region
        %s1685 = ssub.s32 %s31, 2
        // Predicated region
        $region109: #{tpu_custom_call.1} parent=107 // pred_check
          %p1686 = pneg %p400
        $region110: #{tpu_custom_call.1} parent=107 // pred_check_branch
          %1688 = sbr.rel (%p1686) target = $region112
        $region111: #{tpu_custom_call.1} parent=107 // pred_region
          %s1689 = sand.u32 %s385, 1
          %s1690 = scalar_lea.sflag [#allocation5], %s1689
          %s1691 = sand.u32 %s385, 1
          %s1692 = smul.addr %s1691, 8
          %s1693 = scalar_lea.vmem [#allocation12], %s1692
          %1694 = dma.done %s1690, 128
        $region112: #{tpu_custom_call.1} parent=107 // pred_fallthru
          _
      $region108: #{tpu_custom_call.1} parent=5 // pred_fallthru
        _
    $region6: #{tpu_custom_call.1} parent=1 // loop_footer
      %s35 = sadd.s32 1, %s31
    $region7: #{tpu_custom_call.1} parent=1 // loop_footer_branch
      %30 = sbr.rel target = $region3
    $region8: #{tpu_custom_call.1} parent=1 // loop_exit
      _
    %1695 = vsyncpa [#allocation4], 1
    %s1696 = scalar_lea.sflag [#allocation4], 1
    %1697 = vsyncpa %s1696, 1
    %1698 = vsyncpa [#allocation7], 1
    %s1699 = scalar_lea.sflag [#allocation7], 1
    %1700 = vsyncpa %s1699, 1
    %1701 = vsyncpa [#allocation10], 1
    %s1702 = scalar_lea.sflag [#allocation10], 1
    %1703 = vsyncpa %s1702, 1
    %1704 = vsyncpa [#allocation5], 1
    %s1705 = scalar_lea.sflag [#allocation5], 1
    %1706 = vsyncpa %s1705, 1

</llo_original>
